<compile_context>
chip_gen: v7x
topology: tpu7x:2x2x1
jax: 0.10.0
libtpu: 0.0.40
codegen_flags: <defaults>
</compile_context>

<pallas_src>
import functools

import jax
import jax.numpy as jnp
from jax.experimental import pallas as pl
from jax.experimental.pallas import tpu as pltpu

E_CHAR = 50                 # self.e_char
M_WORD = 21                 # self.m_word
K = 5                       # conv kernel size
CONV_LEN = M_WORD - K + 1   # 17 conv output positions (maxpool window)


def _round_up(x, m):
    return ((x + m - 1) // m) * m


def _model_embeddings_kernel(ids_ref, tc_ref, bconv_ref,
                             wproj_ref, bproj_ref, wgate_ref, bgate_ref,
                             o_ref):
    """One block of words: one-hot lookup+conv (K large GEMMs) + maxpool + highway."""
    bn = o_ref.shape[0]          # words in this block (multiple of 8)
    e_pad = o_ref.shape[1]       # lane-dense embed size (multiple of 128)
    v_pad = tc_ref.shape[1]      # lane-dense char vocab (multiple of 128)
    cdt = tc_ref.dtype           # MXU operand dtype (f32, or bf16 on v6e/v7x)

    ids = ids_ref[...]                                             # (21, bn) int32
    iota_v = jax.lax.broadcasted_iota(jnp.int32, (M_WORD, bn, v_pad), 2)
    onehot = jnp.where(ids[:, :, None] == iota_v, 1.0, 0.0).astype(cdt)  # (21,bn,V)

    # conv[n, t, :] = sum_dk onehot[t+dk, n, :] @ tc[dk]   (bias added after max).
    # Rows of `acc` are t-major: row = t*bn + n.
    acc = jnp.zeros((CONV_LEN * bn, e_pad), jnp.float32)
    for dk in range(K):                                   # K=5 static, large GEMMs
        win = onehot[dk:dk + CONV_LEN]                    # (17, bn, V) aligned slice
        acc = acc + jnp.dot(win.reshape(CONV_LEN * bn, v_pad), tc_ref[dk],
                            preferred_element_type=jnp.float32)

    # MaxPool over the 17 positions (relu∘max == max∘relu; bias is constant in t,
    # so it is added once after the max).  Aligned static slices -> pure VPU maxes.
    pooled = acc[0:bn]
    for t in range(1, CONV_LEN):
        pooled = jnp.maximum(pooled, acc[t * bn:(t + 1) * bn])
    pooled = jnp.maximum(pooled + bconv_ref[...], 0.0)            # (bn, e_pad) f32

    # Highway: elementwise math in f32, MXU operands in cdt.
    pooled_c = pooled.astype(cdt)
    proj = jnp.maximum(
        jnp.dot(pooled_c, wproj_ref[...], preferred_element_type=jnp.float32)
        + bproj_ref[...], 0.0)
    gate = jax.nn.sigmoid(
        jnp.dot(pooled_c, wgate_ref[...], preferred_element_type=jnp.float32)
        + bgate_ref[...])
    o_ref[...] = (proj * gate + (1.0 - gate) * pooled).astype(o_ref.dtype)


@functools.partial(jax.jit, static_argnames=("block_n", "compute_dtype"))
def model_embeddings_forward(char_ids, params, block_n=256,
                             compute_dtype=jnp.float32):
    """char_ids: (s, b, 21) int -> (s, b, embed_size) f32.

    Pass compute_dtype=jnp.bfloat16 on v6e/v7x to halve weight DMA/VMEM (the
    accumulation and all elementwise math remain f32).
    """
    s, b, m = char_ids.shape
    assert m == M_WORD
    e_word = params["b_conv"].shape[0]
    vocab = params["char_emb"].shape[0]

    n = s * b
    n8 = _round_up(n, 8)
    if n8 <= block_n:
        block_n = n8                        # single block covers everything
    else:
        block_n = _round_up(block_n, 128)   # multi-block: keep (8,128) rule
    n_pad = _round_up(n, block_n)

    v_pad = _round_up(vocab, 128)           # lane-dense one-hot contraction
    e_pad = _round_up(e_word, 128)          # lane-dense output

    # ---- glue: tiny layout / weight-fold work only (plain JAX) ----
    # Char ids, t-major (21, n_pad); padded tail words use char id 0 (sliced off).
    ids = char_ids.reshape(n, M_WORD).astype(jnp.int32)
    ids = jnp.pad(ids, ((0, n_pad - n), (0, 0)))
    ids_t = ids.T                                                   # (21, n_pad)

    # Fold char_emb into the conv weight: tc[k, v, e] = sum_c emb[v, c] * W[e, c, k].
    # (one small constant GEMM per call; the kernel never sees the 50-dim embeddings)
    tc = jnp.einsum("vc,eck->kve",
                    params["char_emb"].astype(jnp.float32),
                    params["w_conv"].astype(jnp.float32))
    tc = jnp.pad(tc, ((0, 0), (0, v_pad - vocab), (0, e_pad - e_word)))
    tc = tc.astype(compute_dtype)                                   # (K, V, E)

    def pad_vec(v):     # (e_word,) -> (1, e_pad) f32
        return jnp.pad(v.astype(jnp.float32), (0, e_pad - e_word)).reshape(1, e_pad)

    def pad_mat(w):     # torch Linear (out, in) -> (e_pad, e_pad) in (in, out) order
        return jnp.pad(w.T.astype(jnp.float32),
                       ((0, e_pad - e_word), (0, e_pad - e_word))).astype(compute_dtype)

    bconv = pad_vec(params["b_conv"])
    wproj = pad_mat(params["w_proj"])
    bproj = pad_vec(params["b_proj"])
    wgate = pad_mat(params["w_gate"])
    bgate = pad_vec(params["b_gate"])

    const2 = lambda i: (0, 0)

    # ---- Pallas hot path ----
    out = pl.pallas_call(
        _model_embeddings_kernel,
        out_shape=jax.ShapeDtypeStruct((n_pad, e_pad), jnp.float32),
        grid_spec=pltpu.PrefetchScalarGridSpec(
            num_scalar_prefetch=0,
            grid=(n_pad // block_n,),
            in_specs=[
                pl.BlockSpec((M_WORD, block_n), lambda i: (0, i)),     # char ids
                pl.BlockSpec((K, v_pad, e_pad), lambda i: (0, 0, 0)),  # folded conv W
                pl.BlockSpec((1, e_pad), const2),                      # b_conv
                pl.BlockSpec((e_pad, e_pad), const2),                  # W_proj
                pl.BlockSpec((1, e_pad), const2),                      # b_proj
                pl.BlockSpec((e_pad, e_pad), const2),                  # W_gate
                pl.BlockSpec((1, e_pad), const2),                      # b_gate
            ],
            out_specs=pl.BlockSpec((block_n, e_pad), lambda i: (i, 0)),
        ),
        compiler_params=pltpu.CompilerParams(
            dimension_semantics=("parallel",),
            vmem_limit_bytes=48 * 1024 * 1024),
    )(ids_t, tc, bconv, wproj, bproj, wgate, bgate)

    return out[:n, :e_word].reshape(s, b, e_word)


def reference_forward(char_ids, params):
    """Pure-JAX reference mirroring the PyTorch module (eval mode)."""
    s, b, _ = char_ids.shape
    emb = jnp.take(params["char_emb"], char_ids, axis=0)        # (s, b, 21, 50)
    x = jnp.transpose(emb, (0, 1, 3, 2)).reshape(s * b, E_CHAR, M_WORD)
    conv = jax.lax.conv_general_dilated(
        x, params["w_conv"], window_strides=(1,), padding="VALID",
        dimension_numbers=("NCH", "OIH", "NCH"))
    conv = conv + params["b_conv"][None, :, None]
    pooled = jnp.max(jax.nn.relu(conv), axis=-1)                # (N, e_word)
    proj = jax.nn.relu(pooled @ params["w_proj"].T + params["b_proj"])
    gate = jax.nn.sigmoid(pooled @ params["w_gate"].T + params["b_gate"])
    hw = proj * gate + (1.0 - gate) * pooled
    return hw.reshape(s, b, -1)


def init_params(key, embed_size, vocab_char_count, pad_idx=0):
    ks = jax.random.split(key, 7)
    scale = 0.1
    char_emb = scale * jax.random.normal(ks[0], (vocab_char_count, E_CHAR), jnp.float32)
    char_emb = char_emb.at[pad_idx].set(0.0)   # nn.Embedding padding_idx row = 0
    return {
        "char_emb": char_emb,
        "w_conv": scale * jax.random.normal(ks[1], (embed_size, E_CHAR, K), jnp.float32),
        "b_conv": scale * jax.random.normal(ks[2], (embed_size,), jnp.float32),
        "w_proj": scale * jax.random.normal(ks[3], (embed_size, embed_size), jnp.float32),
        "b_proj": scale * jax.random.normal(ks[4], (embed_size,), jnp.float32),
        "w_gate": scale * jax.random.normal(ks[5], (embed_size, embed_size), jnp.float32),
        "b_gate": scale * jax.random.normal(ks[6], (embed_size,), jnp.float32),
    }


if __name__ == "__main__":
    key = jax.random.PRNGKey(0)
    k_param, k_in1, k_in2 = jax.random.split(key, 3)

    sentence_len, batch, embed_size, n_chars = 8, 2, 32, 30
    params = init_params(k_param, embed_size, n_chars, pad_idx=0)

    # Small case (single block).
    char_ids = jax.random.randint(
        k_in1, (sentence_len, batch, M_WORD), 0, n_chars, dtype=jnp.int32)
    out = jax.block_until_ready(model_embeddings_forward(char_ids, params))
    assert out.shape == (sentence_len, batch, embed_size)
    ref = jax.block_until_ready(reference_forward(char_ids, params))
    assert jnp.allclose(out, ref, atol=1e-4, rtol=1e-4), (
        float(jnp.max(jnp.abs(out - ref))))

    # Larger case exercising the multi-block grid and padded-tail path.
    char_ids2 = jax.random.randint(
        k_in2, (40, 8, M_WORD), 0, n_chars, dtype=jnp.int32)
    out2 = jax.block_until_ready(model_embeddings_forward(char_ids2, params))
    ref2 = jax.block_until_ready(reference_forward(char_ids2, params))
    assert out2.shape == (40, 8, embed_size)
    assert jnp.allclose(out2, ref2, atol=1e-4, rtol=1e-4), (
        float(jnp.max(jnp.abs(out2 - ref2))))

    print("KERNEL_OK")
</pallas_src>

<mosaic_0001>
module attributes {stable_mosaic.version = 11 : i64} {
  func.func @_model_embeddings_kernel(%arg0: i32, %arg1: memref<21x16xi32, #tpu.memory_space<vmem>>, %arg2: memref<5x128x128xf32, #tpu.memory_space<vmem>>, %arg3: memref<1x128xf32, #tpu.memory_space<vmem>>, %arg4: memref<128x128xf32, #tpu.memory_space<vmem>>, %arg5: memref<1x128xf32, #tpu.memory_space<vmem>>, %arg6: memref<128x128xf32, #tpu.memory_space<vmem>>, %arg7: memref<1x128xf32, #tpu.memory_space<vmem>>, %arg8: memref<16x128xf32, #tpu.memory_space<vmem>>) attributes {dimension_semantics = [#tpu.dimension_semantics<parallel>], iteration_bounds = array<i64: 1>, scalar_prefetch = 0 : i64, scratch_operands = 0 : i64, tpu.core_type = #tpu.core_type<tc>, window_params = [{transform_indices = @transform_0, window_bounds = array<i64: 21, 16>}, {pipeline_mode = #tpu.pipeline_mode<synchronous>, transform_indices = @transform_1, window_bounds = array<i64: 5, 128, 128>}, {pipeline_mode = #tpu.pipeline_mode<synchronous>, transform_indices = @transform_2, window_bounds = array<i64: 1, 128>}, {pipeline_mode = #tpu.pipeline_mode<synchronous>, transform_indices = @transform_3, window_bounds = array<i64: 128, 128>}, {pipeline_mode = #tpu.pipeline_mode<synchronous>, transform_indices = @transform_4, window_bounds = array<i64: 1, 128>}, {pipeline_mode = #tpu.pipeline_mode<synchronous>, transform_indices = @transform_5, window_bounds = array<i64: 128, 128>}, {pipeline_mode = #tpu.pipeline_mode<synchronous>, transform_indices = @transform_6, window_bounds = array<i64: 1, 128>}, {transform_indices = @transform_7, window_bounds = array<i64: 16, 128>}]} {
    %c0 = arith.constant 0 : index
    %c0_0 = arith.constant 0 : index
    %0 = vector.load %arg1[%c0, %c0_0] : memref<21x16xi32, #tpu.memory_space<vmem>>, vector<21x16xi32>
    %1 = tpu.iota {dimensions = array<i32: 2>} : vector<21x16x128xi32>
    %2 = vector.shape_cast %0 : vector<21x16xi32> to vector<21x16x1xi32>
    %3 = vector.broadcast %2 : vector<21x16x1xi32> to vector<21x16x128xi32>
    %4 = arith.cmpi eq, %3, %1 : vector<21x16x128xi32>
    %cst = arith.constant 1.000000e+00 : f32
    %cst_1 = arith.constant 0.000000e+00 : f32
    %5 = vector.broadcast %cst : f32 to vector<21x16x128xf32>
    %6 = vector.broadcast %cst_1 : f32 to vector<21x16x128xf32>
    %7 = arith.select %4, %5, %6 : vector<21x16x128xi1>, vector<21x16x128xf32>
    %cst_2 = arith.constant 0.000000e+00 : f32
    %8 = vector.broadcast %cst_2 : f32 to vector<272x128xf32>
    %9 = vector.extract_strided_slice %7 {offsets = [0, 0, 0], sizes = [17, 16, 128], strides = [1, 1, 1]} : vector<21x16x128xf32> to vector<17x16x128xf32>
    %10 = vector.shape_cast %9 : vector<17x16x128xf32> to vector<272x128xf32>
    %c0_3 = arith.constant 0 : index
    %c0_4 = arith.constant 0 : index
    %c0_5 = arith.constant 0 : index
    %11 = vector.load %arg2[%c0_3, %c0_4, %c0_5] : memref<5x128x128xf32, #tpu.memory_space<vmem>>, vector<1x128x128xf32>
    %12 = vector.shape_cast %11 : vector<1x128x128xf32> to vector<128x128xf32>
    %cst_6 = arith.constant dense<0.000000e+00> : vector<272x128xf32>
    %13 = tpu.matmul %10, %12, %cst_6 {dimension_numbers = #tpu.dot_dimension_numbers<[1], [0], [0], [1], [0, 0, 1, 1], [], []>} : vector<272x128xf32>, vector<128x128xf32>, vector<272x128xf32> -> vector<272x128xf32>
    %14 = arith.addf %8, %13 : vector<272x128xf32>
    %15 = vector.extract_strided_slice %7 {offsets = [1, 0, 0], sizes = [17, 16, 128], strides = [1, 1, 1]} : vector<21x16x128xf32> to vector<17x16x128xf32>
    %16 = vector.shape_cast %15 : vector<17x16x128xf32> to vector<272x128xf32>
    %c1 = arith.constant 1 : index
    %c0_7 = arith.constant 0 : index
    %c0_8 = arith.constant 0 : index
    %17 = vector.load %arg2[%c1, %c0_7, %c0_8] : memref<5x128x128xf32, #tpu.memory_space<vmem>>, vector<1x128x128xf32>
    %18 = vector.shape_cast %17 : vector<1x128x128xf32> to vector<128x128xf32>
    %cst_9 = arith.constant dense<0.000000e+00> : vector<272x128xf32>
    %19 = tpu.matmul %16, %18, %cst_9 {dimension_numbers = #tpu.dot_dimension_numbers<[1], [0], [0], [1], [0, 0, 1, 1], [], []>} : vector<272x128xf32>, vector<128x128xf32>, vector<272x128xf32> -> vector<272x128xf32>
    %20 = arith.addf %14, %19 : vector<272x128xf32>
    %21 = vector.extract_strided_slice %7 {offsets = [2, 0, 0], sizes = [17, 16, 128], strides = [1, 1, 1]} : vector<21x16x128xf32> to vector<17x16x128xf32>
    %22 = vector.shape_cast %21 : vector<17x16x128xf32> to vector<272x128xf32>
    %c2 = arith.constant 2 : index
    %c0_10 = arith.constant 0 : index
    %c0_11 = arith.constant 0 : index
    %23 = vector.load %arg2[%c2, %c0_10, %c0_11] : memref<5x128x128xf32, #tpu.memory_space<vmem>>, vector<1x128x128xf32>
    %24 = vector.shape_cast %23 : vector<1x128x128xf32> to vector<128x128xf32>
    %cst_12 = arith.constant dense<0.000000e+00> : vector<272x128xf32>
    %25 = tpu.matmul %22, %24, %cst_12 {dimension_numbers = #tpu.dot_dimension_numbers<[1], [0], [0], [1], [0, 0, 1, 1], [], []>} : vector<272x128xf32>, vector<128x128xf32>, vector<272x128xf32> -> vector<272x128xf32>
    %26 = arith.addf %20, %25 : vector<272x128xf32>
    %27 = vector.extract_strided_slice %7 {offsets = [3, 0, 0], sizes = [17, 16, 128], strides = [1, 1, 1]} : vector<21x16x128xf32> to vector<17x16x128xf32>
    %28 = vector.shape_cast %27 : vector<17x16x128xf32> to vector<272x128xf32>
    %c3 = arith.constant 3 : index
    %c0_13 = arith.constant 0 : index
    %c0_14 = arith.constant 0 : index
    %29 = vector.load %arg2[%c3, %c0_13, %c0_14] : memref<5x128x128xf32, #tpu.memory_space<vmem>>, vector<1x128x128xf32>
    %30 = vector.shape_cast %29 : vector<1x128x128xf32> to vector<128x128xf32>
    %cst_15 = arith.constant dense<0.000000e+00> : vector<272x128xf32>
    %31 = tpu.matmul %28, %30, %cst_15 {dimension_numbers = #tpu.dot_dimension_numbers<[1], [0], [0], [1], [0, 0, 1, 1], [], []>} : vector<272x128xf32>, vector<128x128xf32>, vector<272x128xf32> -> vector<272x128xf32>
    %32 = arith.addf %26, %31 : vector<272x128xf32>
    %33 = vector.extract_strided_slice %7 {offsets = [4, 0, 0], sizes = [17, 16, 128], strides = [1, 1, 1]} : vector<21x16x128xf32> to vector<17x16x128xf32>
    %34 = vector.shape_cast %33 : vector<17x16x128xf32> to vector<272x128xf32>
    %c4 = arith.constant 4 : index
    %c0_16 = arith.constant 0 : index
    %c0_17 = arith.constant 0 : index
    %35 = vector.load %arg2[%c4, %c0_16, %c0_17] : memref<5x128x128xf32, #tpu.memory_space<vmem>>, vector<1x128x128xf32>
    %36 = vector.shape_cast %35 : vector<1x128x128xf32> to vector<128x128xf32>
    %cst_18 = arith.constant dense<0.000000e+00> : vector<272x128xf32>
    %37 = tpu.matmul %34, %36, %cst_18 {dimension_numbers = #tpu.dot_dimension_numbers<[1], [0], [0], [1], [0, 0, 1, 1], [], []>} : vector<272x128xf32>, vector<128x128xf32>, vector<272x128xf32> -> vector<272x128xf32>
    %38 = arith.addf %32, %37 : vector<272x128xf32>
    %39 = vector.extract_strided_slice %38 {offsets = [0, 0], sizes = [16, 128], strides = [1, 1]} : vector<272x128xf32> to vector<16x128xf32>
    %40 = vector.extract_strided_slice %38 {offsets = [16, 0], sizes = [16, 128], strides = [1, 1]} : vector<272x128xf32> to vector<16x128xf32>
    %41 = arith.maximumf %39, %40 : vector<16x128xf32>
    %42 = vector.extract_strided_slice %38 {offsets = [32, 0], sizes = [16, 128], strides = [1, 1]} : vector<272x128xf32> to vector<16x128xf32>
    %43 = arith.maximumf %41, %42 : vector<16x128xf32>
    %44 = vector.extract_strided_slice %38 {offsets = [48, 0], sizes = [16, 128], strides = [1, 1]} : vector<272x128xf32> to vector<16x128xf32>
    %45 = arith.maximumf %43, %44 : vector<16x128xf32>
    %46 = vector.extract_strided_slice %38 {offsets = [64, 0], sizes = [16, 128], strides = [1, 1]} : vector<272x128xf32> to vector<16x128xf32>
    %47 = arith.maximumf %45, %46 : vector<16x128xf32>
    %48 = vector.extract_strided_slice %38 {offsets = [80, 0], sizes = [16, 128], strides = [1, 1]} : vector<272x128xf32> to vector<16x128xf32>
    %49 = arith.maximumf %47, %48 : vector<16x128xf32>
    %50 = vector.extract_strided_slice %38 {offsets = [96, 0], sizes = [16, 128], strides = [1, 1]} : vector<272x128xf32> to vector<16x128xf32>
    %51 = arith.maximumf %49, %50 : vector<16x128xf32>
    %52 = vector.extract_strided_slice %38 {offsets = [112, 0], sizes = [16, 128], strides = [1, 1]} : vector<272x128xf32> to vector<16x128xf32>
    %53 = arith.maximumf %51, %52 : vector<16x128xf32>
    %54 = vector.extract_strided_slice %38 {offsets = [128, 0], sizes = [16, 128], strides = [1, 1]} : vector<272x128xf32> to vector<16x128xf32>
    %55 = arith.maximumf %53, %54 : vector<16x128xf32>
    %56 = vector.extract_strided_slice %38 {offsets = [144, 0], sizes = [16, 128], strides = [1, 1]} : vector<272x128xf32> to vector<16x128xf32>
    %57 = arith.maximumf %55, %56 : vector<16x128xf32>
    %58 = vector.extract_strided_slice %38 {offsets = [160, 0], sizes = [16, 128], strides = [1, 1]} : vector<272x128xf32> to vector<16x128xf32>
    %59 = arith.maximumf %57, %58 : vector<16x128xf32>
    %60 = vector.extract_strided_slice %38 {offsets = [176, 0], sizes = [16, 128], strides = [1, 1]} : vector<272x128xf32> to vector<16x128xf32>
    %61 = arith.maximumf %59, %60 : vector<16x128xf32>
    %62 = vector.extract_strided_slice %38 {offsets = [192, 0], sizes = [16, 128], strides = [1, 1]} : vector<272x128xf32> to vector<16x128xf32>
    %63 = arith.maximumf %61, %62 : vector<16x128xf32>
    %64 = vector.extract_strided_slice %38 {offsets = [208, 0], sizes = [16, 128], strides = [1, 1]} : vector<272x128xf32> to vector<16x128xf32>
    %65 = arith.maximumf %63, %64 : vector<16x128xf32>
    %66 = vector.extract_strided_slice %38 {offsets = [224, 0], sizes = [16, 128], strides = [1, 1]} : vector<272x128xf32> to vector<16x128xf32>
    %67 = arith.maximumf %65, %66 : vector<16x128xf32>
    %68 = vector.extract_strided_slice %38 {offsets = [240, 0], sizes = [16, 128], strides = [1, 1]} : vector<272x128xf32> to vector<16x128xf32>
    %69 = arith.maximumf %67, %68 : vector<16x128xf32>
    %70 = vector.extract_strided_slice %38 {offsets = [256, 0], sizes = [16, 128], strides = [1, 1]} : vector<272x128xf32> to vector<16x128xf32>
    %71 = arith.maximumf %69, %70 : vector<16x128xf32>
    %c0_19 = arith.constant 0 : index
    %c0_20 = arith.constant 0 : index
    %72 = vector.load %arg3[%c0_19, %c0_20] : memref<1x128xf32, #tpu.memory_space<vmem>>, vector<1x128xf32>
    %73 = vector.broadcast %72 : vector<1x128xf32> to vector<16x128xf32>
    %74 = arith.addf %71, %73 : vector<16x128xf32>
    %cst_21 = arith.constant 0.000000e+00 : f32
    %75 = vector.broadcast %cst_21 : f32 to vector<16x128xf32>
    %76 = arith.maximumf %74, %75 : vector<16x128xf32>
    %c0_22 = arith.constant 0 : index
    %c0_23 = arith.constant 0 : index
    %77 = vector.load %arg4[%c0_22, %c0_23] : memref<128x128xf32, #tpu.memory_space<vmem>>, vector<128x128xf32>
    %cst_24 = arith.constant dense<0.000000e+00> : vector<16x128xf32>
    %78 = tpu.matmul %76, %77, %cst_24 {dimension_numbers = #tpu.dot_dimension_numbers<[1], [0], [0], [1], [0, 0, 1, 1], [], []>} : vector<16x128xf32>, vector<128x128xf32>, vector<16x128xf32> -> vector<16x128xf32>
    %c0_25 = arith.constant 0 : index
    %c0_26 = arith.constant 0 : index
    %79 = vector.load %arg5[%c0_25, %c0_26] : memref<1x128xf32, #tpu.memory_space<vmem>>, vector<1x128xf32>
    %80 = vector.broadcast %79 : vector<1x128xf32> to vector<16x128xf32>
    %81 = arith.addf %78, %80 : vector<16x128xf32>
    %cst_27 = arith.constant 0.000000e+00 : f32
    %82 = vector.broadcast %cst_27 : f32 to vector<16x128xf32>
    %83 = arith.maximumf %81, %82 : vector<16x128xf32>
    %c0_28 = arith.constant 0 : index
    %c0_29 = arith.constant 0 : index
    %84 = vector.load %arg6[%c0_28, %c0_29] : memref<128x128xf32, #tpu.memory_space<vmem>>, vector<128x128xf32>
    %cst_30 = arith.constant dense<0.000000e+00> : vector<16x128xf32>
    %85 = tpu.matmul %76, %84, %cst_30 {dimension_numbers = #tpu.dot_dimension_numbers<[1], [0], [0], [1], [0, 0, 1, 1], [], []>} : vector<16x128xf32>, vector<128x128xf32>, vector<16x128xf32> -> vector<16x128xf32>
    %c0_31 = arith.constant 0 : index
    %c0_32 = arith.constant 0 : index
    %86 = vector.load %arg7[%c0_31, %c0_32] : memref<1x128xf32, #tpu.memory_space<vmem>>, vector<1x128xf32>
    %87 = vector.broadcast %86 : vector<1x128xf32> to vector<16x128xf32>
    %88 = arith.addf %85, %87 : vector<16x128xf32>
    %89 = arith.negf %88 : vector<16x128xf32>
    %90 = math.exp %89 : vector<16x128xf32>
    %cst_33 = arith.constant 1.000000e+00 : f32
    %91 = vector.broadcast %cst_33 : f32 to vector<16x128xf32>
    %92 = arith.addf %91, %90 : vector<16x128xf32>
    %93 = arith.divf %91, %92 : vector<16x128xf32>
    %94 = arith.mulf %83, %93 : vector<16x128xf32>
    %cst_34 = arith.constant 1.000000e+00 : f32
    %95 = vector.broadcast %cst_34 : f32 to vector<16x128xf32>
    %96 = arith.subf %95, %93 : vector<16x128xf32>
    %97 = arith.mulf %96, %76 : vector<16x128xf32>
    %98 = arith.addf %94, %97 : vector<16x128xf32>
    %c0_35 = arith.constant 0 : index
    %c0_36 = arith.constant 0 : index
    %99 = vector.load %arg8[%c0_35, %c0_36] : memref<16x128xf32, #tpu.memory_space<vmem>>, vector<16x128xf32>
    tpu.vector_store %arg8[%c0_35, %c0_36], %98 {strides = array<i32>} : memref<16x128xf32, #tpu.memory_space<vmem>>, vector<16x128xf32>,
    return
  }
  func.func @transform_0(%arg0: i32) -> (i32, i32) {
    %c0_i32 = arith.constant 0 : i32
    %c0_i32_0 = arith.constant 0 : i32
    return %c0_i32, %arg0 : i32, i32
  }
  func.func @transform_1(%arg0: i32) -> (i32, i32, i32) {
    %c0_i32 = arith.constant 0 : i32
    %c0_i32_0 = arith.constant 0 : i32
    %c0_i32_1 = arith.constant 0 : i32
    %c0_i32_2 = arith.constant 0 : i32
    return %c0_i32, %c0_i32_0, %c0_i32_1 : i32, i32, i32
  }
  func.func @transform_2(%arg0: i32) -> (i32, i32) {
    %c0_i32 = arith.constant 0 : i32
    %c0_i32_0 = arith.constant 0 : i32
    %c0_i32_1 = arith.constant 0 : i32
    return %c0_i32, %c0_i32_0 : i32, i32
  }
  func.func @transform_3(%arg0: i32) -> (i32, i32) {
    %c0_i32 = arith.constant 0 : i32
    %c0_i32_0 = arith.constant 0 : i32
    %c0_i32_1 = arith.constant 0 : i32
    return %c0_i32, %c0_i32_0 : i32, i32
  }
  func.func @transform_4(%arg0: i32) -> (i32, i32) {
    %c0_i32 = arith.constant 0 : i32
    %c0_i32_0 = arith.constant 0 : i32
    %c0_i32_1 = arith.constant 0 : i32
    return %c0_i32, %c0_i32_0 : i32, i32
  }
  func.func @transform_5(%arg0: i32) -> (i32, i32) {
    %c0_i32 = arith.constant 0 : i32
    %c0_i32_0 = arith.constant 0 : i32
    %c0_i32_1 = arith.constant 0 : i32
    return %c0_i32, %c0_i32_0 : i32, i32
  }
  func.func @transform_6(%arg0: i32) -> (i32, i32) {
    %c0_i32 = arith.constant 0 : i32
    %c0_i32_0 = arith.constant 0 : i32
    %c0_i32_1 = arith.constant 0 : i32
    return %c0_i32, %c0_i32_0 : i32, i32
  }
  func.func @transform_7(%arg0: i32) -> (i32, i32) {
    %c0_i32 = arith.constant 0 : i32
    %c0_i32_0 = arith.constant 0 : i32
    return %arg0, %c0_i32 : i32, i32
  }
}

</mosaic_0001>

<llo_original>
// kernel: model_embeddings_forward.1
$region0: #{model_embeddings_forward.1}
  #allocation0 [shape = 'u32[]', space=smem, size = 0x4, offset = 0x4, fixed_abs, tag = 'smem constant byte address 0x4 - core index']
  #allocation1 [shape = 'u32[144,128]{1,0:T(1,128)}', space=vmem, size = 0x12000, scoped, tag = 'internal scratch']
  %s0 = inlined_call_operand.vmem [shape: s32[21,16], index: 0, kind: input, shape index: {}]
  %s1 = inlined_call_operand.vmem [shape: f32[5,128,128], index: 1, kind: input, shape index: {}]
  %s2 = inlined_call_operand.vmem [shape: f32[1,128], index: 2, kind: input, shape index: {}]
  %s3 = inlined_call_operand.vmem [shape: f32[128,128], index: 3, kind: input, shape index: {}]
  %s4 = inlined_call_operand.vmem [shape: f32[1,128], index: 4, kind: input, shape index: {}]
  %s5 = inlined_call_operand.vmem [shape: f32[128,128], index: 5, kind: input, shape index: {}]
  %s6 = inlined_call_operand.vmem [shape: f32[1,128], index: 6, kind: input, shape index: {}]
  %s7 = inlined_call_operand.hbm [shape: f32[16,128], index: 7, kind: output, shape index: {}]
  %s8 = sld [smem:[#allocation0]]
  $region38: #{model_embeddings_forward.1} parent=0
    _
  %s10 = ssub.s32 1, %s8
  %s11 = scalar_select 0, %s10, %s8
  $region1: #{model_embeddings_forward.1} parent=0
    #allocation2 [shape = 'u8[8192]{0}', space=vmem, size = 0x2000, scoped, tag = 'output window, operand 0, single buffered']
    #allocation3 [shape = 's32[1]{0}', space=sflag, size = 0x4, scoped, tag = 'scoped memory for model_embeddings_forward.1']
    %12 = vsyncpa [#allocation3], 0
    // Predicated region
    $region2: #{model_embeddings_forward.1} parent=1 // pred_check
      _
    $region3: #{model_embeddings_forward.1} parent=1 // pred_check_branch
      %14 = sbr.rel (0) target = $region5
    $region4: #{model_embeddings_forward.1} parent=1 // pred_region
      _
    $region5: #{model_embeddings_forward.1} parent=1 // pred_fallthru
      _
    // Predicated region
    $region6: #{model_embeddings_forward.1} parent=1 // pred_check
      _
    $region7: #{model_embeddings_forward.1} parent=1 // pred_check_branch
      %16 = sbr.rel (0) target = $region9
    $region8: #{model_embeddings_forward.1} parent=1 // pred_region
      _
    $region9: #{model_embeddings_forward.1} parent=1 // pred_fallthru
      _
    // Predicated region
    $region10: #{model_embeddings_forward.1} parent=1 // pred_check
      _
    $region11: #{model_embeddings_forward.1} parent=1 // pred_check_branch
      %18 = sbr.rel (0) target = $region13
    $region12: #{model_embeddings_forward.1} parent=1 // pred_region
      _
    $region13: #{model_embeddings_forward.1} parent=1 // pred_fallthru
      _
    // Predicated region
    $region14: #{model_embeddings_forward.1} parent=1 // pred_check
      _
    $region15: #{model_embeddings_forward.1} parent=1 // pred_check_branch
      %20 = sbr.rel (0) target = $region17
    $region16: #{model_embeddings_forward.1} parent=1 // pred_region
      _
    $region17: #{model_embeddings_forward.1} parent=1 // pred_fallthru
      _
    // Predicated region
    $region18: #{model_embeddings_forward.1} parent=1 // pred_check
      _
    $region19: #{model_embeddings_forward.1} parent=1 // pred_check_branch
      %22 = sbr.rel (0) target = $region21
    $region20: #{model_embeddings_forward.1} parent=1 // pred_region
      _
    $region21: #{model_embeddings_forward.1} parent=1 // pred_fallthru
      _
    // Predicated region
    $region22: #{model_embeddings_forward.1} parent=1 // pred_check
      _
    $region23: #{model_embeddings_forward.1} parent=1 // pred_check_branch
      %24 = sbr.rel (0) target = $region25
    $region24: #{model_embeddings_forward.1} parent=1 // pred_region
      _
    $region25: #{model_embeddings_forward.1} parent=1 // pred_fallthru
      _
    // Predicated region
    $region26: #{model_embeddings_forward.1} parent=1 // pred_check
      _
    $region27: #{model_embeddings_forward.1} parent=1 // pred_check_branch
      %26 = sbr.rel (0) target = $region29
    $region28: #{model_embeddings_forward.1} parent=1 // pred_region
      _
    $region29: #{model_embeddings_forward.1} parent=1 // pred_fallthru
      _
    %v27 = vld [vmem:[%s0] sm:$0xff]
    %v28 = vld [vmem:[%s0 + $0x8] sm:$0xff]
    %v29 = vld [vmem:[%s0 + $0x10] sm:$0x1f]
    %v30 = vlaneseq
    %v31 = vand.u32 %v30, 127
    %v32 = vlaneseq
    %v33 = vshrl.u32 %v32, 7
    %v34 = vsub.s32 0, %v33
    %v35 = vrot.slane %v27, %v34
    %37 = vbcast.lane.b32.xlu0 %v35, 256
    %v38 = vpop.permute.xlu0 %37
    %s40 = sor.u32 256, 8
    %41 = vbcast.lane.b32.xlu0 %v35, %s40
    %v42 = vpop.permute.xlu0 %41
    %v43 = vlaneseq
    %v44 = vshrl.u32 %v43, 7
    %v45 = vsub.s32 1, %v44
    %v46 = vrot.slane %v27, %v45
    %48 = vbcast.lane.b32.xlu0 %v46, 256
    %v49 = vpop.permute.xlu0 %48
    %s51 = sor.u32 256, 8
    %52 = vbcast.lane.b32.xlu0 %v46, %s51
    %v53 = vpop.permute.xlu0 %52
    %v54 = vlaneseq
    %v55 = vshrl.u32 %v54, 7
    %v56 = vsub.s32 2, %v55
    %v57 = vrot.slane %v27, %v56
    %59 = vbcast.lane.b32.xlu0 %v57, 256
    %v60 = vpop.permute.xlu0 %59
    %s62 = sor.u32 256, 8
    %63 = vbcast.lane.b32.xlu0 %v57, %s62
    %v64 = vpop.permute.xlu0 %63
    %v65 = vlaneseq
    %v66 = vshrl.u32 %v65, 7
    %v67 = vsub.s32 3, %v66
    %v68 = vrot.slane %v27, %v67
    %70 = vbcast.lane.b32.xlu0 %v68, 256
    %v71 = vpop.permute.xlu0 %70
    %s73 = sor.u32 256, 8
    %74 = vbcast.lane.b32.xlu0 %v68, %s73
    %v75 = vpop.permute.xlu0 %74
    %v76 = vlaneseq
    %v77 = vshrl.u32 %v76, 7
    %v78 = vsub.s32 4, %v77
    %v79 = vrot.slane %v27, %v78
    %81 = vbcast.lane.b32.xlu0 %v79, 256
    %v82 = vpop.permute.xlu0 %81
    %s84 = sor.u32 256, 8
    %85 = vbcast.lane.b32.xlu0 %v79, %s84
    %v86 = vpop.permute.xlu0 %85
    %v87 = vlaneseq
    %v88 = vshrl.u32 %v87, 7
    %v89 = vsub.s32 5, %v88
    %v90 = vrot.slane %v27, %v89
    %92 = vbcast.lane.b32.xlu0 %v90, 256
    %v93 = vpop.permute.xlu0 %92
    %s95 = sor.u32 256, 8
    %96 = vbcast.lane.b32.xlu0 %v90, %s95
    %v97 = vpop.permute.xlu0 %96
    %v98 = vlaneseq
    %v99 = vshrl.u32 %v98, 7
    %v100 = vsub.s32 6, %v99
    %v101 = vrot.slane %v27, %v100
    %103 = vbcast.lane.b32.xlu0 %v101, 256
    %v104 = vpop.permute.xlu0 %103
    %s106 = sor.u32 256, 8
    %107 = vbcast.lane.b32.xlu0 %v101, %s106
    %v108 = vpop.permute.xlu0 %107
    %v109 = vlaneseq
    %v110 = vshrl.u32 %v109, 7
    %v111 = vsub.s32 7, %v110
    %v112 = vrot.slane %v27, %v111
    %114 = vbcast.lane.b32.xlu0 %v112, 256
    %v115 = vpop.permute.xlu0 %114
    %s117 = sor.u32 256, 8
    %118 = vbcast.lane.b32.xlu0 %v112, %s117
    %v119 = vpop.permute.xlu0 %118
    %v120 = vlaneseq
    %v121 = vshrl.u32 %v120, 7
    %v122 = vsub.s32 0, %v121
    %v123 = vrot.slane %v28, %v122
    %125 = vbcast.lane.b32.xlu0 %v123, 256
    %v126 = vpop.permute.xlu0 %125
    %s128 = sor.u32 256, 8
    %129 = vbcast.lane.b32.xlu0 %v123, %s128
    %v130 = vpop.permute.xlu0 %129
    %v131 = vlaneseq
    %v132 = vshrl.u32 %v131, 7
    %v133 = vsub.s32 1, %v132
    %v134 = vrot.slane %v28, %v133
    %136 = vbcast.lane.b32.xlu0 %v134, 256
    %v137 = vpop.permute.xlu0 %136
    %s139 = sor.u32 256, 8
    %140 = vbcast.lane.b32.xlu0 %v134, %s139
    %v141 = vpop.permute.xlu0 %140
    %v142 = vlaneseq
    %v143 = vshrl.u32 %v142, 7
    %v144 = vsub.s32 2, %v143
    %v145 = vrot.slane %v28, %v144
    %147 = vbcast.lane.b32.xlu0 %v145, 256
    %v148 = vpop.permute.xlu0 %147
    %s150 = sor.u32 256, 8
    %151 = vbcast.lane.b32.xlu0 %v145, %s150
    %v152 = vpop.permute.xlu0 %151
    %v153 = vlaneseq
    %v154 = vshrl.u32 %v153, 7
    %v155 = vsub.s32 3, %v154
    %v156 = vrot.slane %v28, %v155
    %158 = vbcast.lane.b32.xlu0 %v156, 256
    %v159 = vpop.permute.xlu0 %158
    %s161 = sor.u32 256, 8
    %162 = vbcast.lane.b32.xlu0 %v156, %s161
    %v163 = vpop.permute.xlu0 %162
    %v164 = vlaneseq
    %v165 = vshrl.u32 %v164, 7
    %v166 = vsub.s32 4, %v165
    %v167 = vrot.slane %v28, %v166
    %169 = vbcast.lane.b32.xlu0 %v167, 256
    %v170 = vpop.permute.xlu0 %169
    %s172 = sor.u32 256, 8
    %173 = vbcast.lane.b32.xlu0 %v167, %s172
    %v174 = vpop.permute.xlu0 %173
    %v175 = vlaneseq
    %v176 = vshrl.u32 %v175, 7
    %v177 = vsub.s32 5, %v176
    %v178 = vrot.slane %v28, %v177
    %180 = vbcast.lane.b32.xlu0 %v178, 256
    %v181 = vpop.permute.xlu0 %180
    %s183 = sor.u32 256, 8
    %184 = vbcast.lane.b32.xlu0 %v178, %s183
    %v185 = vpop.permute.xlu0 %184
    %v186 = vlaneseq
    %v187 = vshrl.u32 %v186, 7
    %v188 = vsub.s32 6, %v187
    %v189 = vrot.slane %v28, %v188
    %191 = vbcast.lane.b32.xlu0 %v189, 256
    %v192 = vpop.permute.xlu0 %191
    %s194 = sor.u32 256, 8
    %195 = vbcast.lane.b32.xlu0 %v189, %s194
    %v196 = vpop.permute.xlu0 %195
    %v197 = vlaneseq
    %v198 = vshrl.u32 %v197, 7
    %v199 = vsub.s32 7, %v198
    %v200 = vrot.slane %v28, %v199
    %202 = vbcast.lane.b32.xlu0 %v200, 256
    %v203 = vpop.permute.xlu0 %202
    %s205 = sor.u32 256, 8
    %206 = vbcast.lane.b32.xlu0 %v200, %s205
    %v207 = vpop.permute.xlu0 %206
    %v208 = vlaneseq
    %v209 = vshrl.u32 %v208, 7
    %v210 = vsub.s32 0, %v209
    %v211 = vrot.slane %v29, %v210
    %213 = vbcast.lane.b32.xlu0 %v211, 256
    %v214 = vpop.permute.xlu0 %213
    %s216 = sor.u32 256, 8
    %217 = vbcast.lane.b32.xlu0 %v211, %s216
    %v218 = vpop.permute.xlu0 %217
    %v219 = vlaneseq
    %v220 = vshrl.u32 %v219, 7
    %v221 = vsub.s32 1, %v220
    %v222 = vrot.slane %v29, %v221
    %224 = vbcast.lane.b32.xlu0 %v222, 256
    %v225 = vpop.permute.xlu0 %224
    %s227 = sor.u32 256, 8
    %228 = vbcast.lane.b32.xlu0 %v222, %s227
    %v229 = vpop.permute.xlu0 %228
    %v230 = vlaneseq
    %v231 = vshrl.u32 %v230, 7
    %v232 = vsub.s32 2, %v231
    %v233 = vrot.slane %v29, %v232
    %235 = vbcast.lane.b32.xlu0 %v233, 256
    %v236 = vpop.permute.xlu0 %235
    %s238 = sor.u32 256, 8
    %239 = vbcast.lane.b32.xlu0 %v233, %s238
    %v240 = vpop.permute.xlu0 %239
    %v241 = vlaneseq
    %v242 = vshrl.u32 %v241, 7
    %v243 = vsub.s32 3, %v242
    %v244 = vrot.slane %v29, %v243
    %246 = vbcast.lane.b32.xlu0 %v244, 256
    %v247 = vpop.permute.xlu0 %246
    %s249 = sor.u32 256, 8
    %250 = vbcast.lane.b32.xlu0 %v244, %s249
    %v251 = vpop.permute.xlu0 %250
    %v252 = vlaneseq
    %v253 = vshrl.u32 %v252, 7
    %v254 = vsub.s32 4, %v253
    %v255 = vrot.slane %v29, %v254
    %257 = vbcast.lane.b32.xlu0 %v255, 256
    %v258 = vpop.permute.xlu0 %257
    %s260 = sor.u32 256, 8
    %261 = vbcast.lane.b32.xlu0 %v255, %s260
    %v262 = vpop.permute.xlu0 %261
    %vm263 = vcmp.eq.s32.totalorder %v38, %v31
    %vm264 = vcmp.eq.s32.totalorder %v42, %v31
    %vm265 = vcmp.eq.s32.totalorder %v49, %v31
    %vm266 = vcmp.eq.s32.totalorder %v53, %v31
    %vm267 = vcmp.eq.s32.totalorder %v60, %v31
    %vm268 = vcmp.eq.s32.totalorder %v64, %v31
    %vm269 = vcmp.eq.s32.totalorder %v71, %v31
    %vm270 = vcmp.eq.s32.totalorder %v75, %v31
    %vm271 = vcmp.eq.s32.totalorder %v82, %v31
    %vm272 = vcmp.eq.s32.totalorder %v86, %v31
    %vm273 = vcmp.eq.s32.totalorder %v93, %v31
    %vm274 = vcmp.eq.s32.totalorder %v97, %v31
    %vm275 = vcmp.eq.s32.totalorder %v104, %v31
    %vm276 = vcmp.eq.s32.totalorder %v108, %v31
    %vm277 = vcmp.eq.s32.totalorder %v115, %v31
    %vm278 = vcmp.eq.s32.totalorder %v119, %v31
    %vm279 = vcmp.eq.s32.totalorder %v126, %v31
    %vm280 = vcmp.eq.s32.totalorder %v130, %v31
    %vm281 = vcmp.eq.s32.totalorder %v137, %v31
    %vm282 = vcmp.eq.s32.totalorder %v141, %v31
    %vm283 = vcmp.eq.s32.totalorder %v148, %v31
    %vm284 = vcmp.eq.s32.totalorder %v152, %v31
    %vm285 = vcmp.eq.s32.totalorder %v159, %v31
    %vm286 = vcmp.eq.s32.totalorder %v163, %v31
    %vm287 = vcmp.eq.s32.totalorder %v170, %v31
    %vm288 = vcmp.eq.s32.totalorder %v174, %v31
    %vm289 = vcmp.eq.s32.totalorder %v181, %v31
    %vm290 = vcmp.eq.s32.totalorder %v185, %v31
    %vm291 = vcmp.eq.s32.totalorder %v192, %v31
    %vm292 = vcmp.eq.s32.totalorder %v196, %v31
    %vm293 = vcmp.eq.s32.totalorder %v203, %v31
    %vm294 = vcmp.eq.s32.totalorder %v207, %v31
    %vm295 = vcmp.eq.s32.totalorder %v214, %v31
    %vm296 = vcmp.eq.s32.totalorder %v218, %v31
    %vm297 = vcmp.eq.s32.totalorder %v225, %v31
    %vm298 = vcmp.eq.s32.totalorder %v229, %v31
    %vm299 = vcmp.eq.s32.totalorder %v236, %v31
    %vm300 = vcmp.eq.s32.totalorder %v240, %v31
    %vm301 = vcmp.eq.s32.totalorder %v247, %v31
    %vm302 = vcmp.eq.s32.totalorder %v251, %v31
    %vm303 = vcmp.eq.s32.totalorder %v258, %v31
    %vm304 = vcmp.eq.s32.totalorder %v262, %v31
    %v305 = vsel %vm263, 1.0, 0.0
    %v306 = vsel %vm264, 1.0, 0.0
    %v307 = vsel %vm265, 1.0, 0.0
    %v308 = vsel %vm266, 1.0, 0.0
    %v309 = vsel %vm267, 1.0, 0.0
    %v310 = vsel %vm268, 1.0, 0.0
    %v311 = vsel %vm269, 1.0, 0.0
    %v312 = vsel %vm270, 1.0, 0.0
    %v313 = vsel %vm271, 1.0, 0.0
    %v314 = vsel %vm272, 1.0, 0.0
    %v315 = vsel %vm273, 1.0, 0.0
    %v316 = vsel %vm274, 1.0, 0.0
    %v317 = vsel %vm275, 1.0, 0.0
    %v318 = vsel %vm276, 1.0, 0.0
    %v319 = vsel %vm277, 1.0, 0.0
    %v320 = vsel %vm278, 1.0, 0.0
    %v321 = vsel %vm279, 1.0, 0.0
    %v322 = vsel %vm280, 1.0, 0.0
    %v323 = vsel %vm281, 1.0, 0.0
    %v324 = vsel %vm282, 1.0, 0.0
    %v325 = vsel %vm283, 1.0, 0.0
    %v326 = vsel %vm284, 1.0, 0.0
    %v327 = vsel %vm285, 1.0, 0.0
    %v328 = vsel %vm286, 1.0, 0.0
    %v329 = vsel %vm287, 1.0, 0.0
    %v330 = vsel %vm288, 1.0, 0.0
    %v331 = vsel %vm289, 1.0, 0.0
    %v332 = vsel %vm290, 1.0, 0.0
    %v333 = vsel %vm291, 1.0, 0.0
    %v334 = vsel %vm292, 1.0, 0.0
    %v335 = vsel %vm293, 1.0, 0.0
    %v336 = vsel %vm294, 1.0, 0.0
    %v337 = vsel %vm295, 1.0, 0.0
    %v338 = vsel %vm296, 1.0, 0.0
    %v339 = vsel %vm297, 1.0, 0.0
    %v340 = vsel %vm298, 1.0, 0.0
    %v341 = vsel %vm299, 1.0, 0.0
    %v342 = vsel %vm300, 1.0, 0.0
    %v343 = vsel %vm301, 1.0, 0.0
    %v344 = vsel %vm302, 1.0, 0.0
    %v345 = vsel %vm303, 1.0, 0.0
    %v346 = vsel %vm304, 1.0, 0.0
    %v347 = vld [vmem:[%s1] sm:$0xff]
    %v348 = vld [vmem:[%s1 + $0x8] sm:$0xff]
    %v349 = vld [vmem:[%s1 + $0x10] sm:$0xff]
    %v350 = vld [vmem:[%s1 + $0x18] sm:$0xff]
    %v351 = vld [vmem:[%s1 + $0x20] sm:$0xff]
    %v352 = vld [vmem:[%s1 + $0x28] sm:$0xff]
    %v353 = vld [vmem:[%s1 + $0x30] sm:$0xff]
    %v354 = vld [vmem:[%s1 + $0x38] sm:$0xff]
    %v355 = vld [vmem:[%s1 + $0x40] sm:$0xff]
    %v356 = vld [vmem:[%s1 + $0x48] sm:$0xff]
    %v357 = vld [vmem:[%s1 + $0x50] sm:$0xff]
    %v358 = vld [vmem:[%s1 + $0x58] sm:$0xff]
    %v359 = vld [vmem:[%s1 + $0x60] sm:$0xff]
    %v360 = vld [vmem:[%s1 + $0x68] sm:$0xff]
    %v361 = vld [vmem:[%s1 + $0x70] sm:$0xff]
    %v362 = vld [vmem:[%s1 + $0x78] sm:$0xff]
    %s363 = scalar_lea.vmem %s1, 128
    %v364 = vld [vmem:[%s363] sm:$0xff]
    %v365 = vld [vmem:[%s363 + $0x8] sm:$0xff]
    %v366 = vld [vmem:[%s363 + $0x10] sm:$0xff]
    %v367 = vld [vmem:[%s363 + $0x18] sm:$0xff]
    %v368 = vld [vmem:[%s363 + $0x20] sm:$0xff]
    %v369 = vld [vmem:[%s363 + $0x28] sm:$0xff]
    %v370 = vld [vmem:[%s363 + $0x30] sm:$0xff]
    %v371 = vld [vmem:[%s363 + $0x38] sm:$0xff]
    %v372 = vld [vmem:[%s363 + $0x40] sm:$0xff]
    %v373 = vld [vmem:[%s363 + $0x48] sm:$0xff]
    %v374 = vld [vmem:[%s363 + $0x50] sm:$0xff]
    %v375 = vld [vmem:[%s363 + $0x58] sm:$0xff]
    %v376 = vld [vmem:[%s363 + $0x60] sm:$0xff]
    %v377 = vld [vmem:[%s363 + $0x68] sm:$0xff]
    %v378 = vld [vmem:[%s363 + $0x70] sm:$0xff]
    %v379 = vld [vmem:[%s363 + $0x78] sm:$0xff]
    %380 = vmatprep.subr.mxu0 0.0
    %381 = vmatpush1.msra.mxu0 %v364
    %382 = vmatprep.subr.mxu0 0.0
    %383 = vmatpush1.msra.mxu0 %v365
    %384 = vmatprep.subr.mxu0 0.0
    %385 = vmatpush1.msra.mxu0 %v366
    %386 = vmatprep.subr.mxu0 0.0
    %387 = vmatpush1.msra.mxu0 %v367
    %388 = vmatprep.subr.mxu0 0.0
    %389 = vmatpush1.msra.mxu0 %v368
    %390 = vmatprep.subr.mxu0 0.0
    %391 = vmatpush1.msra.mxu0 %v369
    %392 = vmatprep.subr.mxu0 0.0
    %393 = vmatpush1.msra.mxu0 %v370
    %394 = vmatprep.subr.mxu0 0.0
    %395 = vmatpush1.msra.mxu0 %v371
    %396 = vmatprep.subr.mxu0 0.0
    %397 = vmatpush1.msra.mxu0 %v372
    %398 = vmatprep.subr.mxu0 0.0
    %399 = vmatpush1.msra.mxu0 %v373
    %400 = vmatprep.subr.mxu0 0.0
    %401 = vmatpush1.msra.mxu0 %v374
    %402 = vmatprep.subr.mxu0 0.0
    %403 = vmatpush1.msra.mxu0 %v375
    %404 = vmatprep.subr.mxu0 0.0
    %405 = vmatpush1.msra.mxu0 %v376
    %406 = vmatprep.subr.mxu0 0.0
    %407 = vmatpush1.msra.mxu0 %v377
    %408 = vmatprep.subr.mxu0 0.0
    %409 = vmatpush1.msra.mxu0 %v378
    %410 = vmatprep.subr.mxu0 0.0
    %411 = vmatpush1.msra.mxu0 %v379
    %412 = vmatprep.subr.mxu0 0.0
    %413 = vmatpush1.msra.mxu0 0.0
    %414 = vmatprep.subr.mxu0 0.0
    %415 = vmatpush1.msra.mxu0 0.0
    %416 = vmatprep.subr.mxu0 0.0
    %417 = vmatpush1.msra.mxu0 0.0
    %418 = vmatprep.subr.mxu0 0.0
    %419 = vmatpush1.msra.mxu0 0.0
    %420 = vmatprep.subr.mxu0 0.0
    %421 = vmatpush1.msra.mxu0 0.0
    %422 = vmatprep.subr.mxu0 0.0
    %423 = vmatpush1.msra.mxu0 0.0
    %424 = vmatprep.subr.mxu0 0.0
    %425 = vmatpush1.msra.mxu0 0.0
    %426 = vmatprep.subr.mxu0 0.0
    %427 = vmatpush1.msra.mxu0 0.0
    %428 = vmatprep.subr.mxu0 0.0
    %429 = vmatpush1.msra.mxu0 0.0
    %430 = vmatprep.subr.mxu0 0.0
    %431 = vmatpush1.msra.mxu0 0.0
    %432 = vmatprep.subr.mxu0 0.0
    %433 = vmatpush1.msra.mxu0 0.0
    %434 = vmatprep.subr.mxu0 0.0
    %435 = vmatpush1.msra.mxu0 0.0
    %436 = vmatprep.subr.mxu0 0.0
    %437 = vmatpush1.msra.mxu0 0.0
    %438 = vmatprep.subr.mxu0 0.0
    %439 = vmatpush1.msra.mxu0 0.0
    %440 = vmatprep.subr.mxu0 0.0
    %441 = vmatpush1.msra.mxu0 0.0
    %442 = vmatprep.subr.mxu0 0.0
    %443 = vmatpush1.msra.mxu0 0.0
    %444 = vmatprep.mubr.f32.mxu0 0.0
    %445 = vmatmul.mubr.f32.gmra.mrb[0].mxu0 %v307
    %v446 = vpop.f32.mrb[0].mxu0
    %v447 = vadd.f32 0.0, %v446
    %v448 = vpop.f32.mrb[0].mxu0
    %449 = vmatprep.mubr.f32.mxu0 0.0
    %450 = vmatmul.mubr.f32.gmra.mrb[0].mxu0 %v308
    %v451 = vpop.f32.mrb[0].mxu0
    %v452 = vadd.f32 0.0, %v451
    %v453 = vpop.f32.mrb[0].mxu0
    %454 = vmatprep.mubr.f32.mxu0 0.0
    %455 = vmatmul.mubr.f32.gmra.mrb[0].mxu0 %v309
    %v456 = vpop.f32.mrb[0].mxu0
    %v457 = vadd.f32 0.0, %v456
    %v458 = vpop.f32.mrb[0].mxu0
    %459 = vmatprep.mubr.f32.mxu0 0.0
    %460 = vmatmul.mubr.f32.gmra.mrb[0].mxu0 %v310
    %v461 = vpop.f32.mrb[0].mxu0
    %v462 = vadd.f32 0.0, %v461
    %v463 = vpop.f32.mrb[0].mxu0
    %464 = vmatprep.mubr.f32.mxu0 0.0
    %465 = vmatmul.mubr.f32.gmra.mrb[0].mxu0 %v311
    %v466 = vpop.f32.mrb[0].mxu0
    %v467 = vadd.f32 0.0, %v466
    %v468 = vpop.f32.mrb[0].mxu0
    %469 = vmatprep.mubr.f32.mxu0 0.0
    %470 = vmatmul.mubr.f32.gmra.mrb[0].mxu0 %v312
    %v471 = vpop.f32.mrb[0].mxu0
    %v472 = vadd.f32 0.0, %v471
    %v473 = vpop.f32.mrb[0].mxu0
    %474 = vmatprep.mubr.f32.mxu0 0.0
    %475 = vmatmul.mubr.f32.gmra.mrb[0].mxu0 %v313
    %v476 = vpop.f32.mrb[0].mxu0
    %v477 = vadd.f32 0.0, %v476
    %v478 = vpop.f32.mrb[0].mxu0
    %479 = vmatprep.mubr.f32.mxu0 0.0
    %480 = vmatmul.mubr.f32.gmra.mrb[0].mxu0 %v314
    %v481 = vpop.f32.mrb[0].mxu0
    %v482 = vadd.f32 0.0, %v481
    %v483 = vpop.f32.mrb[0].mxu0
    %484 = vmatprep.mubr.f32.mxu0 0.0
    %485 = vmatmul.mubr.f32.gmra.mrb[0].mxu0 %v315
    %v486 = vpop.f32.mrb[0].mxu0
    %v487 = vadd.f32 0.0, %v486
    %v488 = vpop.f32.mrb[0].mxu0
    %489 = vmatprep.mubr.f32.mxu0 0.0
    %490 = vmatmul.mubr.f32.gmra.mrb[0].mxu0 %v316
    %v491 = vpop.f32.mrb[0].mxu0
    %v492 = vadd.f32 0.0, %v491
    %v493 = vpop.f32.mrb[0].mxu0
    %494 = vmatprep.mubr.f32.mxu0 0.0
    %495 = vmatmul.mubr.f32.gmra.mrb[0].mxu0 %v317
    %v496 = vpop.f32.mrb[0].mxu0
    %v497 = vadd.f32 0.0, %v496
    %v498 = vpop.f32.mrb[0].mxu0
    %499 = vmatprep.mubr.f32.mxu0 0.0
    %500 = vmatmul.mubr.f32.gmra.mrb[0].mxu0 %v318
    %v501 = vpop.f32.mrb[0].mxu0
    %v502 = vadd.f32 0.0, %v501
    %v503 = vpop.f32.mrb[0].mxu0
    %504 = vmatprep.mubr.f32.mxu0 0.0
    %505 = vmatmul.mubr.f32.gmra.mrb[0].mxu0 %v319
    %v506 = vpop.f32.mrb[0].mxu0
    %v507 = vadd.f32 0.0, %v506
    %v508 = vpop.f32.mrb[0].mxu0
    %509 = vmatprep.mubr.f32.mxu0 0.0
    %510 = vmatmul.mubr.f32.gmra.mrb[0].mxu0 %v320
    %v511 = vpop.f32.mrb[0].mxu0
    %v512 = vadd.f32 0.0, %v511
    %v513 = vpop.f32.mrb[0].mxu0
    %514 = vmatprep.mubr.f32.mxu0 0.0
    %515 = vmatmul.mubr.f32.gmra.mrb[0].mxu0 %v321
    %v516 = vpop.f32.mrb[0].mxu0
    %v517 = vadd.f32 0.0, %v516
    %v518 = vpop.f32.mrb[0].mxu0
    %519 = vmatprep.mubr.f32.mxu0 0.0
    %520 = vmatmul.mubr.f32.gmra.mrb[0].mxu0 %v322
    %v521 = vpop.f32.mrb[0].mxu0
    %v522 = vadd.f32 0.0, %v521
    %v523 = vpop.f32.mrb[0].mxu0
    %524 = vmatprep.mubr.f32.mxu0 0.0
    %525 = vmatmul.mubr.f32.gmra.mrb[0].mxu0 %v323
    %v526 = vpop.f32.mrb[0].mxu0
    %v527 = vadd.f32 0.0, %v526
    %v528 = vpop.f32.mrb[0].mxu0
    %529 = vmatprep.mubr.f32.mxu0 0.0
    %530 = vmatmul.mubr.f32.gmra.mrb[0].mxu0 %v324
    %v531 = vpop.f32.mrb[0].mxu0
    %v532 = vadd.f32 0.0, %v531
    %v533 = vpop.f32.mrb[0].mxu0
    %534 = vmatprep.mubr.f32.mxu0 0.0
    %535 = vmatmul.mubr.f32.gmra.mrb[0].mxu0 %v325
    %v536 = vpop.f32.mrb[0].mxu0
    %v537 = vadd.f32 0.0, %v536
    %v538 = vpop.f32.mrb[0].mxu0
    %539 = vmatprep.mubr.f32.mxu0 0.0
    %540 = vmatmul.mubr.f32.gmra.mrb[0].mxu0 %v326
    %v541 = vpop.f32.mrb[0].mxu0
    %v542 = vadd.f32 0.0, %v541
    %v543 = vpop.f32.mrb[0].mxu0
    %544 = vmatprep.mubr.f32.mxu0 0.0
    %545 = vmatmul.mubr.f32.gmra.mrb[0].mxu0 %v327
    %v546 = vpop.f32.mrb[0].mxu0
    %v547 = vadd.f32 0.0, %v546
    %v548 = vpop.f32.mrb[0].mxu0
    %549 = vmatprep.mubr.f32.mxu0 0.0
    %550 = vmatmul.mubr.f32.gmra.mrb[0].mxu0 %v328
    %v551 = vpop.f32.mrb[0].mxu0
    %v552 = vadd.f32 0.0, %v551
    %v553 = vpop.f32.mrb[0].mxu0
    %554 = vmatprep.mubr.f32.mxu0 0.0
    %555 = vmatmul.mubr.f32.gmra.mrb[0].mxu0 %v329
    %v556 = vpop.f32.mrb[0].mxu0
    %v557 = vadd.f32 0.0, %v556
    %v558 = vpop.f32.mrb[0].mxu0
    %559 = vmatprep.mubr.f32.mxu0 0.0
    %560 = vmatmul.mubr.f32.gmra.mrb[0].mxu0 %v330
    %v561 = vpop.f32.mrb[0].mxu0
    %v562 = vadd.f32 0.0, %v561
    %v563 = vpop.f32.mrb[0].mxu0
    %564 = vmatprep.mubr.f32.mxu0 0.0
    %565 = vmatmul.mubr.f32.gmra.mrb[0].mxu0 %v331
    %v566 = vpop.f32.mrb[0].mxu0
    %v567 = vadd.f32 0.0, %v566
    %v568 = vpop.f32.mrb[0].mxu0
    %569 = vmatprep.mubr.f32.mxu0 0.0
    %570 = vmatmul.mubr.f32.gmra.mrb[0].mxu0 %v332
    %v571 = vpop.f32.mrb[0].mxu0
    %v572 = vadd.f32 0.0, %v571
    %v573 = vpop.f32.mrb[0].mxu0
    %574 = vmatprep.mubr.f32.mxu0 0.0
    %575 = vmatmul.mubr.f32.gmra.mrb[0].mxu0 %v333
    %v576 = vpop.f32.mrb[0].mxu0
    %v577 = vadd.f32 0.0, %v576
    %v578 = vpop.f32.mrb[0].mxu0
    %579 = vmatprep.mubr.f32.mxu0 0.0
    %580 = vmatmul.mubr.f32.gmra.mrb[0].mxu0 %v334
    %v581 = vpop.f32.mrb[0].mxu0
    %v582 = vadd.f32 0.0, %v581
    %v583 = vpop.f32.mrb[0].mxu0
    %584 = vmatprep.mubr.f32.mxu0 0.0
    %585 = vmatmul.mubr.f32.gmra.mrb[0].mxu0 %v335
    %v586 = vpop.f32.mrb[0].mxu0
    %v587 = vadd.f32 0.0, %v586
    %v588 = vpop.f32.mrb[0].mxu0
    %589 = vmatprep.mubr.f32.mxu0 0.0
    %590 = vmatmul.mubr.f32.gmra.mrb[0].mxu0 %v336
    %v591 = vpop.f32.mrb[0].mxu0
    %v592 = vadd.f32 0.0, %v591
    %v593 = vpop.f32.mrb[0].mxu0
    %594 = vmatprep.mubr.f32.mxu0 0.0
    %595 = vmatmul.mubr.f32.gmra.mrb[0].mxu0 %v337
    %v596 = vpop.f32.mrb[0].mxu0
    %v597 = vadd.f32 0.0, %v596
    %v598 = vpop.f32.mrb[0].mxu0
    %599 = vmatprep.mubr.f32.mxu0 0.0
    %600 = vmatmul.mubr.f32.gmra.mrb[0].mxu0 %v338
    %v601 = vpop.f32.mrb[0].mxu0
    %v602 = vadd.f32 0.0, %v601
    %v603 = vpop.f32.mrb[0].mxu0
    %604 = vmatprep.mubr.f32.mxu0 0.0
    %605 = vmatmul.mubr.f32.gmra.mrb[0].mxu0 %v339
    %v606 = vpop.f32.mrb[0].mxu0
    %v607 = vadd.f32 0.0, %v606
    %v608 = vpop.f32.mrb[0].mxu0
    %609 = vmatprep.mubr.f32.mxu0 0.0
    %610 = vmatmul.mubr.f32.gmra.mrb[0].mxu0 %v340
    %v611 = vpop.f32.mrb[0].mxu0
    %v612 = vadd.f32 0.0, %v611
    %v613 = vpop.f32.mrb[0].mxu0
    %614 = vdwg.mxu0
    %615 = vmatprep.subr.mxu0 0.0
    %616 = vmatpush1.msra.mxu0 %v347
    %617 = vmatprep.subr.mxu0 0.0
    %618 = vmatpush1.msra.mxu0 %v348
    %619 = vmatprep.subr.mxu0 0.0
    %620 = vmatpush1.msra.mxu0 %v349
    %621 = vmatprep.subr.mxu0 0.0
    %622 = vmatpush1.msra.mxu0 %v350
    %623 = vmatprep.subr.mxu0 0.0
    %624 = vmatpush1.msra.mxu0 %v351
    %625 = vmatprep.subr.mxu0 0.0
    %626 = vmatpush1.msra.mxu0 %v352
    %627 = vmatprep.subr.mxu0 0.0
    %628 = vmatpush1.msra.mxu0 %v353
    %629 = vmatprep.subr.mxu0 0.0
    %630 = vmatpush1.msra.mxu0 %v354
    %631 = vmatprep.subr.mxu0 0.0
    %632 = vmatpush1.msra.mxu0 %v355
    %633 = vmatprep.subr.mxu0 0.0
    %634 = vmatpush1.msra.mxu0 %v356
    %635 = vmatprep.subr.mxu0 0.0
    %636 = vmatpush1.msra.mxu0 %v357
    %637 = vmatprep.subr.mxu0 0.0
    %638 = vmatpush1.msra.mxu0 %v358
    %639 = vmatprep.subr.mxu0 0.0
    %640 = vmatpush1.msra.mxu0 %v359
    %641 = vmatprep.subr.mxu0 0.0
    %642 = vmatpush1.msra.mxu0 %v360
    %643 = vmatprep.subr.mxu0 0.0
    %644 = vmatpush1.msra.mxu0 %v361
    %645 = vmatprep.subr.mxu0 0.0
    %646 = vmatpush1.msra.mxu0 %v362
    %647 = vmatprep.subr.mxu0 0.0
    %648 = vmatpush1.msra.mxu0 0.0
    %649 = vmatprep.subr.mxu0 0.0
    %650 = vmatpush1.msra.mxu0 0.0
    %651 = vmatprep.subr.mxu0 0.0
    %652 = vmatpush1.msra.mxu0 0.0
    %653 = vmatprep.subr.mxu0 0.0
    %654 = vmatpush1.msra.mxu0 0.0
    %655 = vmatprep.subr.mxu0 0.0
    %656 = vmatpush1.msra.mxu0 0.0
    %657 = vmatprep.subr.mxu0 0.0
    %658 = vmatpush1.msra.mxu0 0.0
    %659 = vmatprep.subr.mxu0 0.0
    %660 = vmatpush1.msra.mxu0 0.0
    %661 = vmatprep.subr.mxu0 0.0
    %662 = vmatpush1.msra.mxu0 0.0
    %663 = vmatprep.subr.mxu0 0.0
    %664 = vmatpush1.msra.mxu0 0.0
    %665 = vmatprep.subr.mxu0 0.0
    %666 = vmatpush1.msra.mxu0 0.0
    %667 = vmatprep.subr.mxu0 0.0
    %668 = vmatpush1.msra.mxu0 0.0
    %669 = vmatprep.subr.mxu0 0.0
    %670 = vmatpush1.msra.mxu0 0.0
    %671 = vmatprep.subr.mxu0 0.0
    %672 = vmatpush1.msra.mxu0 0.0
    %673 = vmatprep.subr.mxu0 0.0
    %674 = vmatpush1.msra.mxu0 0.0
    %675 = vmatprep.subr.mxu0 0.0
    %676 = vmatpush1.msra.mxu0 0.0
    %677 = vmatprep.subr.mxu0 0.0
    %678 = vmatpush1.msra.mxu0 0.0
    %679 = vmatprep.mubr.f32.mxu0 0.0
    %680 = vmatmul.mubr.f32.gmra.mrb[0].mxu0 %v305
    %v681 = vpop.f32.mrb[0].mxu0
    %v682 = vadd.f32 %v447, %v681
    %v683 = vpop.f32.mrb[0].mxu0
    %684 = vmatprep.mubr.f32.mxu0 0.0
    %685 = vmatmul.mubr.f32.gmra.mrb[0].mxu0 %v306
    %v686 = vpop.f32.mrb[0].mxu0
    %v687 = vadd.f32 %v452, %v686
    %v688 = vpop.f32.mrb[0].mxu0
    %689 = vmatprep.mubr.f32.mxu0 0.0
    %690 = vmatmul.mubr.f32.gmra.mrb[0].mxu0 %v307
    %v691 = vpop.f32.mrb[0].mxu0
    %v692 = vadd.f32 %v457, %v691
    %v693 = vpop.f32.mrb[0].mxu0
    %694 = vmatprep.mubr.f32.mxu0 0.0
    %695 = vmatmul.mubr.f32.gmra.mrb[0].mxu0 %v308
    %v696 = vpop.f32.mrb[0].mxu0
    %v697 = vadd.f32 %v462, %v696
    %v698 = vpop.f32.mrb[0].mxu0
    %699 = vmatprep.mubr.f32.mxu0 0.0
    %700 = vmatmul.mubr.f32.gmra.mrb[0].mxu0 %v309
    %v701 = vpop.f32.mrb[0].mxu0
    %v702 = vadd.f32 %v467, %v701
    %v703 = vpop.f32.mrb[0].mxu0
    %704 = vmatprep.mubr.f32.mxu0 0.0
    %705 = vmatmul.mubr.f32.gmra.mrb[0].mxu0 %v310
    %v706 = vpop.f32.mrb[0].mxu0
    %v707 = vadd.f32 %v472, %v706
    %v708 = vpop.f32.mrb[0].mxu0
    %709 = vmatprep.mubr.f32.mxu0 0.0
    %710 = vmatmul.mubr.f32.gmra.mrb[0].mxu0 %v311
    %v711 = vpop.f32.mrb[0].mxu0
    %v712 = vadd.f32 %v477, %v711
    %v713 = vpop.f32.mrb[0].mxu0
    %714 = vmatprep.mubr.f32.mxu0 0.0
    %715 = vmatmul.mubr.f32.gmra.mrb[0].mxu0 %v312
    %v716 = vpop.f32.mrb[0].mxu0
    %v717 = vadd.f32 %v482, %v716
    %v718 = vpop.f32.mrb[0].mxu0
    %719 = vmatprep.mubr.f32.mxu0 0.0
    %720 = vmatmul.mubr.f32.gmra.mrb[0].mxu0 %v313
    %v721 = vpop.f32.mrb[0].mxu0
    %v722 = vadd.f32 %v487, %v721
    %v723 = vpop.f32.mrb[0].mxu0
    %724 = vmatprep.mubr.f32.mxu0 0.0
    %725 = vmatmul.mubr.f32.gmra.mrb[0].mxu0 %v314
    %v726 = vpop.f32.mrb[0].mxu0
    %v727 = vadd.f32 %v492, %v726
    %v728 = vpop.f32.mrb[0].mxu0
    %729 = vmatprep.mubr.f32.mxu0 0.0
    %730 = vmatmul.mubr.f32.gmra.mrb[0].mxu0 %v315
    %v731 = vpop.f32.mrb[0].mxu0
    %v732 = vadd.f32 %v497, %v731
    %v733 = vpop.f32.mrb[0].mxu0
    %734 = vmatprep.mubr.f32.mxu0 0.0
    %735 = vmatmul.mubr.f32.gmra.mrb[0].mxu0 %v316
    %v736 = vpop.f32.mrb[0].mxu0
    %v737 = vadd.f32 %v502, %v736
    %v738 = vpop.f32.mrb[0].mxu0
    %739 = vmatprep.mubr.f32.mxu0 0.0
    %740 = vmatmul.mubr.f32.gmra.mrb[0].mxu0 %v317
    %v741 = vpop.f32.mrb[0].mxu0
    %v742 = vadd.f32 %v507, %v741
    %v743 = vpop.f32.mrb[0].mxu0
    %744 = vmatprep.mubr.f32.mxu0 0.0
    %745 = vmatmul.mubr.f32.gmra.mrb[0].mxu0 %v318
    %v746 = vpop.f32.mrb[0].mxu0
    %v747 = vadd.f32 %v512, %v746
    %v748 = vpop.f32.mrb[0].mxu0
    %749 = vmatprep.mubr.f32.mxu0 0.0
    %750 = vmatmul.mubr.f32.gmra.mrb[0].mxu0 %v319
    %v751 = vpop.f32.mrb[0].mxu0
    %v752 = vadd.f32 %v517, %v751
    %v753 = vpop.f32.mrb[0].mxu0
    %754 = vmatprep.mubr.f32.mxu0 0.0
    %755 = vmatmul.mubr.f32.gmra.mrb[0].mxu0 %v320
    %v756 = vpop.f32.mrb[0].mxu0
    %v757 = vadd.f32 %v522, %v756
    %v758 = vpop.f32.mrb[0].mxu0
    %759 = vmatprep.mubr.f32.mxu0 0.0
    %760 = vmatmul.mubr.f32.gmra.mrb[0].mxu0 %v321
    %v761 = vpop.f32.mrb[0].mxu0
    %v762 = vadd.f32 %v527, %v761
    %v763 = vpop.f32.mrb[0].mxu0
    %764 = vmatprep.mubr.f32.mxu0 0.0
    %765 = vmatmul.mubr.f32.gmra.mrb[0].mxu0 %v322
    %v766 = vpop.f32.mrb[0].mxu0
    %v767 = vadd.f32 %v532, %v766
    %v768 = vpop.f32.mrb[0].mxu0
    %769 = vmatprep.mubr.f32.mxu0 0.0
    %770 = vmatmul.mubr.f32.gmra.mrb[0].mxu0 %v323
    %v771 = vpop.f32.mrb[0].mxu0
    %v772 = vadd.f32 %v537, %v771
    %v773 = vpop.f32.mrb[0].mxu0
    %774 = vmatprep.mubr.f32.mxu0 0.0
    %775 = vmatmul.mubr.f32.gmra.mrb[0].mxu0 %v324
    %v776 = vpop.f32.mrb[0].mxu0
    %v777 = vadd.f32 %v542, %v776
    %v778 = vpop.f32.mrb[0].mxu0
    %779 = vmatprep.mubr.f32.mxu0 0.0
    %780 = vmatmul.mubr.f32.gmra.mrb[0].mxu0 %v325
    %v781 = vpop.f32.mrb[0].mxu0
    %v782 = vadd.f32 %v547, %v781
    %v783 = vpop.f32.mrb[0].mxu0
    %784 = vmatprep.mubr.f32.mxu0 0.0
    %785 = vmatmul.mubr.f32.gmra.mrb[0].mxu0 %v326
    %v786 = vpop.f32.mrb[0].mxu0
    %v787 = vadd.f32 %v552, %v786
    %v788 = vpop.f32.mrb[0].mxu0
    %789 = vmatprep.mubr.f32.mxu0 0.0
    %790 = vmatmul.mubr.f32.gmra.mrb[0].mxu0 %v327
    %v791 = vpop.f32.mrb[0].mxu0
    %v792 = vadd.f32 %v557, %v791
    %v793 = vpop.f32.mrb[0].mxu0
    %794 = vmatprep.mubr.f32.mxu0 0.0
    %795 = vmatmul.mubr.f32.gmra.mrb[0].mxu0 %v328
    %v796 = vpop.f32.mrb[0].mxu0
    %v797 = vadd.f32 %v562, %v796
    %v798 = vpop.f32.mrb[0].mxu0
    %799 = vmatprep.mubr.f32.mxu0 0.0
    %800 = vmatmul.mubr.f32.gmra.mrb[0].mxu0 %v329
    %v801 = vpop.f32.mrb[0].mxu0
    %v802 = vadd.f32 %v567, %v801
    %v803 = vpop.f32.mrb[0].mxu0
    %804 = vmatprep.mubr.f32.mxu0 0.0
    %805 = vmatmul.mubr.f32.gmra.mrb[0].mxu0 %v330
    %v806 = vpop.f32.mrb[0].mxu0
    %v807 = vadd.f32 %v572, %v806
    %v808 = vpop.f32.mrb[0].mxu0
    %809 = vmatprep.mubr.f32.mxu0 0.0
    %810 = vmatmul.mubr.f32.gmra.mrb[0].mxu0 %v331
    %v811 = vpop.f32.mrb[0].mxu0
    %v812 = vadd.f32 %v577, %v811
    %v813 = vpop.f32.mrb[0].mxu0
    %814 = vmatprep.mubr.f32.mxu0 0.0
    %815 = vmatmul.mubr.f32.gmra.mrb[0].mxu0 %v332
    %v816 = vpop.f32.mrb[0].mxu0
    %v817 = vadd.f32 %v582, %v816
    %v818 = vpop.f32.mrb[0].mxu0
    %819 = vmatprep.mubr.f32.mxu0 0.0
    %820 = vmatmul.mubr.f32.gmra.mrb[0].mxu0 %v333
    %v821 = vpop.f32.mrb[0].mxu0
    %v822 = vadd.f32 %v587, %v821
    %v823 = vpop.f32.mrb[0].mxu0
    %824 = vmatprep.mubr.f32.mxu0 0.0
    %825 = vmatmul.mubr.f32.gmra.mrb[0].mxu0 %v334
    %v826 = vpop.f32.mrb[0].mxu0
    %v827 = vadd.f32 %v592, %v826
    %v828 = vpop.f32.mrb[0].mxu0
    %829 = vmatprep.mubr.f32.mxu0 0.0
    %830 = vmatmul.mubr.f32.gmra.mrb[0].mxu0 %v335
    %v831 = vpop.f32.mrb[0].mxu0
    %v832 = vadd.f32 %v597, %v831
    %v833 = vpop.f32.mrb[0].mxu0
    %834 = vmatprep.mubr.f32.mxu0 0.0
    %835 = vmatmul.mubr.f32.gmra.mrb[0].mxu0 %v336
    %v836 = vpop.f32.mrb[0].mxu0
    %v837 = vadd.f32 %v602, %v836
    %v838 = vpop.f32.mrb[0].mxu0
    %839 = vmatprep.mubr.f32.mxu0 0.0
    %840 = vmatmul.mubr.f32.gmra.mrb[0].mxu0 %v337
    %v841 = vpop.f32.mrb[0].mxu0
    %v842 = vadd.f32 %v607, %v841
    %v843 = vpop.f32.mrb[0].mxu0
    %844 = vmatprep.mubr.f32.mxu0 0.0
    %845 = vmatmul.mubr.f32.gmra.mrb[0].mxu0 %v338
    %v846 = vpop.f32.mrb[0].mxu0
    %v847 = vadd.f32 %v612, %v846
    %v848 = vpop.f32.mrb[0].mxu0
    %849 = vdwg.mxu0
    %s850 = scalar_lea.vmem %s1, 256
    %v851 = vld [vmem:[%s850] sm:$0xff]
    %v852 = vld [vmem:[%s850 + $0x8] sm:$0xff]
    %v853 = vld [vmem:[%s850 + $0x10] sm:$0xff]
    %v854 = vld [vmem:[%s850 + $0x18] sm:$0xff]
    %v855 = vld [vmem:[%s850 + $0x20] sm:$0xff]
    %v856 = vld [vmem:[%s850 + $0x28] sm:$0xff]
    %v857 = vld [vmem:[%s850 + $0x30] sm:$0xff]
    %v858 = vld [vmem:[%s850 + $0x38] sm:$0xff]
    %v859 = vld [vmem:[%s850 + $0x40] sm:$0xff]
    %v860 = vld [vmem:[%s850 + $0x48] sm:$0xff]
    %v861 = vld [vmem:[%s850 + $0x50] sm:$0xff]
    %v862 = vld [vmem:[%s850 + $0x58] sm:$0xff]
    %v863 = vld [vmem:[%s850 + $0x60] sm:$0xff]
    %v864 = vld [vmem:[%s850 + $0x68] sm:$0xff]
    %v865 = vld [vmem:[%s850 + $0x70] sm:$0xff]
    %v866 = vld [vmem:[%s850 + $0x78] sm:$0xff]
    %867 = vmatprep.subr.mxu0 0.0
    %868 = vmatpush1.msra.mxu0 %v851
    %869 = vmatprep.subr.mxu0 0.0
    %870 = vmatpush1.msra.mxu0 %v852
    %871 = vmatprep.subr.mxu0 0.0
    %872 = vmatpush1.msra.mxu0 %v853
    %873 = vmatprep.subr.mxu0 0.0
    %874 = vmatpush1.msra.mxu0 %v854
    %875 = vmatprep.subr.mxu0 0.0
    %876 = vmatpush1.msra.mxu0 %v855
    %877 = vmatprep.subr.mxu0 0.0
    %878 = vmatpush1.msra.mxu0 %v856
    %879 = vmatprep.subr.mxu0 0.0
    %880 = vmatpush1.msra.mxu0 %v857
    %881 = vmatprep.subr.mxu0 0.0
    %882 = vmatpush1.msra.mxu0 %v858
    %883 = vmatprep.subr.mxu0 0.0
    %884 = vmatpush1.msra.mxu0 %v859
    %885 = vmatprep.subr.mxu0 0.0
    %886 = vmatpush1.msra.mxu0 %v860
    %887 = vmatprep.subr.mxu0 0.0
    %888 = vmatpush1.msra.mxu0 %v861
    %889 = vmatprep.subr.mxu0 0.0
    %890 = vmatpush1.msra.mxu0 %v862
    %891 = vmatprep.subr.mxu0 0.0
    %892 = vmatpush1.msra.mxu0 %v863
    %893 = vmatprep.subr.mxu0 0.0
    %894 = vmatpush1.msra.mxu0 %v864
    %895 = vmatprep.subr.mxu0 0.0
    %896 = vmatpush1.msra.mxu0 %v865
    %897 = vmatprep.subr.mxu0 0.0
    %898 = vmatpush1.msra.mxu0 %v866
    %899 = vmatprep.subr.mxu0 0.0
    %900 = vmatpush1.msra.mxu0 0.0
    %901 = vmatprep.subr.mxu0 0.0
    %902 = vmatpush1.msra.mxu0 0.0
    %903 = vmatprep.subr.mxu0 0.0
    %904 = vmatpush1.msra.mxu0 0.0
    %905 = vmatprep.subr.mxu0 0.0
    %906 = vmatpush1.msra.mxu0 0.0
    %907 = vmatprep.subr.mxu0 0.0
    %908 = vmatpush1.msra.mxu0 0.0
    %909 = vmatprep.subr.mxu0 0.0
    %910 = vmatpush1.msra.mxu0 0.0
    %911 = vmatprep.subr.mxu0 0.0
    %912 = vmatpush1.msra.mxu0 0.0
    %913 = vmatprep.subr.mxu0 0.0
    %914 = vmatpush1.msra.mxu0 0.0
    %915 = vmatprep.subr.mxu0 0.0
    %916 = vmatpush1.msra.mxu0 0.0
    %917 = vmatprep.subr.mxu0 0.0
    %918 = vmatpush1.msra.mxu0 0.0
    %919 = vmatprep.subr.mxu0 0.0
    %920 = vmatpush1.msra.mxu0 0.0
    %921 = vmatprep.subr.mxu0 0.0
    %922 = vmatpush1.msra.mxu0 0.0
    %923 = vmatprep.subr.mxu0 0.0
    %924 = vmatpush1.msra.mxu0 0.0
    %925 = vmatprep.subr.mxu0 0.0
    %926 = vmatpush1.msra.mxu0 0.0
    %927 = vmatprep.subr.mxu0 0.0
    %928 = vmatpush1.msra.mxu0 0.0
    %929 = vmatprep.subr.mxu0 0.0
    %930 = vmatpush1.msra.mxu0 0.0
    %931 = vmatprep.mubr.f32.mxu0 0.0
    %932 = vmatmul.mubr.f32.gmra.mrb[0].mxu0 %v309
    %v933 = vpop.f32.mrb[0].mxu0
    %v934 = vadd.f32 0.0, %v933
    %v935 = vpop.f32.mrb[0].mxu0
    %936 = vmatprep.mubr.f32.mxu0 0.0
    %937 = vmatmul.mubr.f32.gmra.mrb[0].mxu0 %v310
    %v938 = vpop.f32.mrb[0].mxu0
    %v939 = vadd.f32 0.0, %v938
    %v940 = vpop.f32.mrb[0].mxu0
    %941 = vmatprep.mubr.f32.mxu0 0.0
    %942 = vmatmul.mubr.f32.gmra.mrb[0].mxu0 %v311
    %v943 = vpop.f32.mrb[0].mxu0
    %v944 = vadd.f32 0.0, %v943
    %v945 = vpop.f32.mrb[0].mxu0
    %946 = vmatprep.mubr.f32.mxu0 0.0
    %947 = vmatmul.mubr.f32.gmra.mrb[0].mxu0 %v312
    %v948 = vpop.f32.mrb[0].mxu0
    %v949 = vadd.f32 0.0, %v948
    %v950 = vpop.f32.mrb[0].mxu0
    %951 = vmatprep.mubr.f32.mxu0 0.0
    %952 = vmatmul.mubr.f32.gmra.mrb[0].mxu0 %v313
    %v953 = vpop.f32.mrb[0].mxu0
    %v954 = vadd.f32 0.0, %v953
    %v955 = vpop.f32.mrb[0].mxu0
    %956 = vmatprep.mubr.f32.mxu0 0.0
    %957 = vmatmul.mubr.f32.gmra.mrb[0].mxu0 %v314
    %v958 = vpop.f32.mrb[0].mxu0
    %v959 = vadd.f32 0.0, %v958
    %v960 = vpop.f32.mrb[0].mxu0
    %961 = vmatprep.mubr.f32.mxu0 0.0
    %962 = vmatmul.mubr.f32.gmra.mrb[0].mxu0 %v315
    %v963 = vpop.f32.mrb[0].mxu0
    %v964 = vadd.f32 0.0, %v963
    %v965 = vpop.f32.mrb[0].mxu0
    %966 = vmatprep.mubr.f32.mxu0 0.0
    %967 = vmatmul.mubr.f32.gmra.mrb[0].mxu0 %v316
    %v968 = vpop.f32.mrb[0].mxu0
    %v969 = vadd.f32 0.0, %v968
    %v970 = vpop.f32.mrb[0].mxu0
    %971 = vmatprep.mubr.f32.mxu0 0.0
    %972 = vmatmul.mubr.f32.gmra.mrb[0].mxu0 %v317
    %v973 = vpop.f32.mrb[0].mxu0
    %v974 = vadd.f32 0.0, %v973
    %v975 = vpop.f32.mrb[0].mxu0
    %976 = vmatprep.mubr.f32.mxu0 0.0
    %977 = vmatmul.mubr.f32.gmra.mrb[0].mxu0 %v318
    %v978 = vpop.f32.mrb[0].mxu0
    %v979 = vadd.f32 0.0, %v978
    %v980 = vpop.f32.mrb[0].mxu0
    %981 = vmatprep.mubr.f32.mxu0 0.0
    %982 = vmatmul.mubr.f32.gmra.mrb[0].mxu0 %v319
    %v983 = vpop.f32.mrb[0].mxu0
    %v984 = vadd.f32 0.0, %v983
    %v985 = vpop.f32.mrb[0].mxu0
    %986 = vmatprep.mubr.f32.mxu0 0.0
    %987 = vmatmul.mubr.f32.gmra.mrb[0].mxu0 %v320
    %v988 = vpop.f32.mrb[0].mxu0
    %v989 = vadd.f32 0.0, %v988
    %v990 = vpop.f32.mrb[0].mxu0
    %991 = vmatprep.mubr.f32.mxu0 0.0
    %992 = vmatmul.mubr.f32.gmra.mrb[0].mxu0 %v321
    %v993 = vpop.f32.mrb[0].mxu0
    %v994 = vadd.f32 0.0, %v993
    %v995 = vpop.f32.mrb[0].mxu0
    %996 = vmatprep.mubr.f32.mxu0 0.0
    %997 = vmatmul.mubr.f32.gmra.mrb[0].mxu0 %v322
    %v998 = vpop.f32.mrb[0].mxu0
    %v999 = vadd.f32 0.0, %v998
    %v1000 = vpop.f32.mrb[0].mxu0
    %1001 = vmatprep.mubr.f32.mxu0 0.0
    %1002 = vmatmul.mubr.f32.gmra.mrb[0].mxu0 %v323
    %v1003 = vpop.f32.mrb[0].mxu0
    %v1004 = vadd.f32 0.0, %v1003
    %v1005 = vpop.f32.mrb[0].mxu0
    %1006 = vmatprep.mubr.f32.mxu0 0.0
    %1007 = vmatmul.mubr.f32.gmra.mrb[0].mxu0 %v324
    %v1008 = vpop.f32.mrb[0].mxu0
    %v1009 = vadd.f32 0.0, %v1008
    %v1010 = vpop.f32.mrb[0].mxu0
    %1011 = vmatprep.mubr.f32.mxu0 0.0
    %1012 = vmatmul.mubr.f32.gmra.mrb[0].mxu0 %v325
    %v1013 = vpop.f32.mrb[0].mxu0
    %v1014 = vadd.f32 0.0, %v1013
    %v1015 = vpop.f32.mrb[0].mxu0
    %1016 = vmatprep.mubr.f32.mxu0 0.0
    %1017 = vmatmul.mubr.f32.gmra.mrb[0].mxu0 %v326
    %v1018 = vpop.f32.mrb[0].mxu0
    %v1019 = vadd.f32 0.0, %v1018
    %v1020 = vpop.f32.mrb[0].mxu0
    %1021 = vmatprep.mubr.f32.mxu0 0.0
    %1022 = vmatmul.mubr.f32.gmra.mrb[0].mxu0 %v327
    %v1023 = vpop.f32.mrb[0].mxu0
    %v1024 = vadd.f32 0.0, %v1023
    %v1025 = vpop.f32.mrb[0].mxu0
    %1026 = vmatprep.mubr.f32.mxu0 0.0
    %1027 = vmatmul.mubr.f32.gmra.mrb[0].mxu0 %v328
    %v1028 = vpop.f32.mrb[0].mxu0
    %v1029 = vadd.f32 0.0, %v1028
    %v1030 = vpop.f32.mrb[0].mxu0
    %1031 = vmatprep.mubr.f32.mxu0 0.0
    %1032 = vmatmul.mubr.f32.gmra.mrb[0].mxu0 %v329
    %v1033 = vpop.f32.mrb[0].mxu0
    %v1034 = vadd.f32 0.0, %v1033
    %v1035 = vpop.f32.mrb[0].mxu0
    %1036 = vmatprep.mubr.f32.mxu0 0.0
    %1037 = vmatmul.mubr.f32.gmra.mrb[0].mxu0 %v330
    %v1038 = vpop.f32.mrb[0].mxu0
    %v1039 = vadd.f32 0.0, %v1038
    %v1040 = vpop.f32.mrb[0].mxu0
    %1041 = vmatprep.mubr.f32.mxu0 0.0
    %1042 = vmatmul.mubr.f32.gmra.mrb[0].mxu0 %v331
    %v1043 = vpop.f32.mrb[0].mxu0
    %v1044 = vadd.f32 0.0, %v1043
    %v1045 = vpop.f32.mrb[0].mxu0
    %1046 = vmatprep.mubr.f32.mxu0 0.0
    %1047 = vmatmul.mubr.f32.gmra.mrb[0].mxu0 %v332
    %v1048 = vpop.f32.mrb[0].mxu0
    %v1049 = vadd.f32 0.0, %v1048
    %v1050 = vpop.f32.mrb[0].mxu0
    %1051 = vmatprep.mubr.f32.mxu0 0.0
    %1052 = vmatmul.mubr.f32.gmra.mrb[0].mxu0 %v333
    %v1053 = vpop.f32.mrb[0].mxu0
    %v1054 = vadd.f32 0.0, %v1053
    %v1055 = vpop.f32.mrb[0].mxu0
    %1056 = vmatprep.mubr.f32.mxu0 0.0
    %1057 = vmatmul.mubr.f32.gmra.mrb[0].mxu0 %v334
    %v1058 = vpop.f32.mrb[0].mxu0
    %v1059 = vadd.f32 0.0, %v1058
    %v1060 = vpop.f32.mrb[0].mxu0
    %1061 = vmatprep.mubr.f32.mxu0 0.0
    %1062 = vmatmul.mubr.f32.gmra.mrb[0].mxu0 %v335
    %v1063 = vpop.f32.mrb[0].mxu0
    %v1064 = vadd.f32 0.0, %v1063
    %v1065 = vpop.f32.mrb[0].mxu0
    %1066 = vmatprep.mubr.f32.mxu0 0.0
    %1067 = vmatmul.mubr.f32.gmra.mrb[0].mxu0 %v336
    %v1068 = vpop.f32.mrb[0].mxu0
    %v1069 = vadd.f32 0.0, %v1068
    %v1070 = vpop.f32.mrb[0].mxu0
    %1071 = vmatprep.mubr.f32.mxu0 0.0
    %1072 = vmatmul.mubr.f32.gmra.mrb[0].mxu0 %v337
    %v1073 = vpop.f32.mrb[0].mxu0
    %v1074 = vadd.f32 0.0, %v1073
    %v1075 = vpop.f32.mrb[0].mxu0
    %1076 = vmatprep.mubr.f32.mxu0 0.0
    %1077 = vmatmul.mubr.f32.gmra.mrb[0].mxu0 %v338
    %v1078 = vpop.f32.mrb[0].mxu0
    %v1079 = vadd.f32 0.0, %v1078
    %v1080 = vpop.f32.mrb[0].mxu0
    %1081 = vmatprep.mubr.f32.mxu0 0.0
    %1082 = vmatmul.mubr.f32.gmra.mrb[0].mxu0 %v339
    %v1083 = vpop.f32.mrb[0].mxu0
    %v1084 = vadd.f32 0.0, %v1083
    %v1085 = vpop.f32.mrb[0].mxu0
    %1086 = vmatprep.mubr.f32.mxu0 0.0
    %1087 = vmatmul.mubr.f32.gmra.mrb[0].mxu0 %v340
    %v1088 = vpop.f32.mrb[0].mxu0
    %v1089 = vadd.f32 0.0, %v1088
    %v1090 = vpop.f32.mrb[0].mxu0
    %1091 = vmatprep.mubr.f32.mxu0 0.0
    %1092 = vmatmul.mubr.f32.gmra.mrb[0].mxu0 %v341
    %v1093 = vpop.f32.mrb[0].mxu0
    %v1094 = vadd.f32 0.0, %v1093
    %v1095 = vpop.f32.mrb[0].mxu0
    %1096 = vmatprep.mubr.f32.mxu0 0.0
    %1097 = vmatmul.mubr.f32.gmra.mrb[0].mxu0 %v342
    %v1098 = vpop.f32.mrb[0].mxu0
    %v1099 = vadd.f32 0.0, %v1098
    %v1100 = vpop.f32.mrb[0].mxu0
    %1101 = vdwg.mxu0
    %v1102 = vadd.f32 %v682, %v934
    %v1103 = vadd.f32 %v687, %v939
    %v1104 = vadd.f32 %v692, %v944
    %v1105 = vadd.f32 %v697, %v949
    %v1106 = vadd.f32 %v702, %v954
    %v1107 = vadd.f32 %v707, %v959
    %v1108 = vadd.f32 %v712, %v964
    %v1109 = vadd.f32 %v717, %v969
    %v1110 = vadd.f32 %v722, %v974
    %v1111 = vadd.f32 %v727, %v979
    %v1112 = vadd.f32 %v732, %v984
    %v1113 = vadd.f32 %v737, %v989
    %v1114 = vadd.f32 %v742, %v994
    %v1115 = vadd.f32 %v747, %v999
    %v1116 = vadd.f32 %v752, %v1004
    %v1117 = vadd.f32 %v757, %v1009
    %v1118 = vadd.f32 %v762, %v1014
    %v1119 = vadd.f32 %v767, %v1019
    %v1120 = vadd.f32 %v772, %v1024
    %v1121 = vadd.f32 %v777, %v1029
    %v1122 = vadd.f32 %v782, %v1034
    %v1123 = vadd.f32 %v787, %v1039
    %v1124 = vadd.f32 %v792, %v1044
    %v1125 = vadd.f32 %v797, %v1049
    %v1126 = vadd.f32 %v802, %v1054
    %v1127 = vadd.f32 %v807, %v1059
    %v1128 = vadd.f32 %v812, %v1064
    %v1129 = vadd.f32 %v817, %v1069
    %v1130 = vadd.f32 %v822, %v1074
    %v1131 = vadd.f32 %v827, %v1079
    %v1132 = vadd.f32 %v832, %v1084
    %v1133 = vadd.f32 %v837, %v1089
    %v1134 = vadd.f32 %v842, %v1094
    %v1135 = vadd.f32 %v847, %v1099
    %s1136 = scalar_lea.vmem %s1, 384
    %v1137 = vld [vmem:[%s1136] sm:$0xff]
    %v1138 = vld [vmem:[%s1136 + $0x8] sm:$0xff]
    %v1139 = vld [vmem:[%s1136 + $0x10] sm:$0xff]
    %v1140 = vld [vmem:[%s1136 + $0x18] sm:$0xff]
    %v1141 = vld [vmem:[%s1136 + $0x20] sm:$0xff]
    %v1142 = vld [vmem:[%s1136 + $0x28] sm:$0xff]
    %v1143 = vld [vmem:[%s1136 + $0x30] sm:$0xff]
    %v1144 = vld [vmem:[%s1136 + $0x38] sm:$0xff]
    %v1145 = vld [vmem:[%s1136 + $0x40] sm:$0xff]
    %v1146 = vld [vmem:[%s1136 + $0x48] sm:$0xff]
    %v1147 = vld [vmem:[%s1136 + $0x50] sm:$0xff]
    %v1148 = vld [vmem:[%s1136 + $0x58] sm:$0xff]
    %v1149 = vld [vmem:[%s1136 + $0x60] sm:$0xff]
    %v1150 = vld [vmem:[%s1136 + $0x68] sm:$0xff]
    %v1151 = vld [vmem:[%s1136 + $0x70] sm:$0xff]
    %v1152 = vld [vmem:[%s1136 + $0x78] sm:$0xff]
    %1153 = vmatprep.subr.mxu0 0.0
    %1154 = vmatpush1.msra.mxu0 %v1137
    %1155 = vmatprep.subr.mxu0 0.0
    %1156 = vmatpush1.msra.mxu0 %v1138
    %1157 = vmatprep.subr.mxu0 0.0
    %1158 = vmatpush1.msra.mxu0 %v1139
    %1159 = vmatprep.subr.mxu0 0.0
    %1160 = vmatpush1.msra.mxu0 %v1140
    %1161 = vmatprep.subr.mxu0 0.0
    %1162 = vmatpush1.msra.mxu0 %v1141
    %1163 = vmatprep.subr.mxu0 0.0
    %1164 = vmatpush1.msra.mxu0 %v1142
    %1165 = vmatprep.subr.mxu0 0.0
    %1166 = vmatpush1.msra.mxu0 %v1143
    %1167 = vmatprep.subr.mxu0 0.0
    %1168 = vmatpush1.msra.mxu0 %v1144
    %1169 = vmatprep.subr.mxu0 0.0
    %1170 = vmatpush1.msra.mxu0 %v1145
    %1171 = vmatprep.subr.mxu0 0.0
    %1172 = vmatpush1.msra.mxu0 %v1146
    %1173 = vmatprep.subr.mxu0 0.0
    %1174 = vmatpush1.msra.mxu0 %v1147
    %1175 = vmatprep.subr.mxu0 0.0
    %1176 = vmatpush1.msra.mxu0 %v1148
    %1177 = vmatprep.subr.mxu0 0.0
    %1178 = vmatpush1.msra.mxu0 %v1149
    %1179 = vmatprep.subr.mxu0 0.0
    %1180 = vmatpush1.msra.mxu0 %v1150
    %1181 = vmatprep.subr.mxu0 0.0
    %1182 = vmatpush1.msra.mxu0 %v1151
    %1183 = vmatprep.subr.mxu0 0.0
    %1184 = vmatpush1.msra.mxu0 %v1152
    %1185 = vmatprep.subr.mxu0 0.0
    %1186 = vmatpush1.msra.mxu0 0.0
    %1187 = vmatprep.subr.mxu0 0.0
    %1188 = vmatpush1.msra.mxu0 0.0
    %1189 = vmatprep.subr.mxu0 0.0
    %1190 = vmatpush1.msra.mxu0 0.0
    %1191 = vmatprep.subr.mxu0 0.0
    %1192 = vmatpush1.msra.mxu0 0.0
    %1193 = vmatprep.subr.mxu0 0.0
    %1194 = vmatpush1.msra.mxu0 0.0
    %1195 = vmatprep.subr.mxu0 0.0
    %1196 = vmatpush1.msra.mxu0 0.0
    %1197 = vmatprep.subr.mxu0 0.0
    %1198 = vmatpush1.msra.mxu0 0.0
    %1199 = vmatprep.subr.mxu0 0.0
    %1200 = vmatpush1.msra.mxu0 0.0
    %1201 = vmatprep.subr.mxu0 0.0
    %1202 = vmatpush1.msra.mxu0 0.0
    %1203 = vmatprep.subr.mxu0 0.0
    %1204 = vmatpush1.msra.mxu0 0.0
    %1205 = vmatprep.subr.mxu0 0.0
    %1206 = vmatpush1.msra.mxu0 0.0
    %1207 = vmatprep.subr.mxu0 0.0
    %1208 = vmatpush1.msra.mxu0 0.0
    %1209 = vmatprep.subr.mxu0 0.0
    %1210 = vmatpush1.msra.mxu0 0.0
    %1211 = vmatprep.subr.mxu0 0.0
    %1212 = vmatpush1.msra.mxu0 0.0
    %1213 = vmatprep.subr.mxu0 0.0
    %1214 = vmatpush1.msra.mxu0 0.0
    %1215 = vmatprep.subr.mxu0 0.0
    %1216 = vmatpush1.msra.mxu0 0.0
    %1217 = vmatprep.mubr.f32.mxu0 0.0
    %1218 = vmatmul.mubr.f32.gmra.mrb[0].mxu0 %v311
    %v1219 = vpop.f32.mrb[0].mxu0
    %v1220 = vadd.f32 0.0, %v1219
    %v1221 = vpop.f32.mrb[0].mxu0
    %1222 = vmatprep.mubr.f32.mxu0 0.0
    %1223 = vmatmul.mubr.f32.gmra.mrb[0].mxu0 %v312
    %v1224 = vpop.f32.mrb[0].mxu0
    %v1225 = vadd.f32 0.0, %v1224
    %v1226 = vpop.f32.mrb[0].mxu0
    %1227 = vmatprep.mubr.f32.mxu0 0.0
    %1228 = vmatmul.mubr.f32.gmra.mrb[0].mxu0 %v313
    %v1229 = vpop.f32.mrb[0].mxu0
    %v1230 = vadd.f32 0.0, %v1229
    %v1231 = vpop.f32.mrb[0].mxu0
    %1232 = vmatprep.mubr.f32.mxu0 0.0
    %1233 = vmatmul.mubr.f32.gmra.mrb[0].mxu0 %v314
    %v1234 = vpop.f32.mrb[0].mxu0
    %v1235 = vadd.f32 0.0, %v1234
    %v1236 = vpop.f32.mrb[0].mxu0
    %1237 = vmatprep.mubr.f32.mxu0 0.0
    %1238 = vmatmul.mubr.f32.gmra.mrb[0].mxu0 %v315
    %v1239 = vpop.f32.mrb[0].mxu0
    %v1240 = vadd.f32 0.0, %v1239
    %v1241 = vpop.f32.mrb[0].mxu0
    %1242 = vmatprep.mubr.f32.mxu0 0.0
    %1243 = vmatmul.mubr.f32.gmra.mrb[0].mxu0 %v316
    %v1244 = vpop.f32.mrb[0].mxu0
    %v1245 = vadd.f32 0.0, %v1244
    %v1246 = vpop.f32.mrb[0].mxu0
    %1247 = vmatprep.mubr.f32.mxu0 0.0
    %1248 = vmatmul.mubr.f32.gmra.mrb[0].mxu0 %v317
    %v1249 = vpop.f32.mrb[0].mxu0
    %v1250 = vadd.f32 0.0, %v1249
    %v1251 = vpop.f32.mrb[0].mxu0
    %1252 = vmatprep.mubr.f32.mxu0 0.0
    %1253 = vmatmul.mubr.f32.gmra.mrb[0].mxu0 %v318
    %v1254 = vpop.f32.mrb[0].mxu0
    %v1255 = vadd.f32 0.0, %v1254
    %v1256 = vpop.f32.mrb[0].mxu0
    %1257 = vmatprep.mubr.f32.mxu0 0.0
    %1258 = vmatmul.mubr.f32.gmra.mrb[0].mxu0 %v319
    %v1259 = vpop.f32.mrb[0].mxu0
    %v1260 = vadd.f32 0.0, %v1259
    %v1261 = vpop.f32.mrb[0].mxu0
    %1262 = vmatprep.mubr.f32.mxu0 0.0
    %1263 = vmatmul.mubr.f32.gmra.mrb[0].mxu0 %v320
    %v1264 = vpop.f32.mrb[0].mxu0
    %v1265 = vadd.f32 0.0, %v1264
    %v1266 = vpop.f32.mrb[0].mxu0
    %1267 = vmatprep.mubr.f32.mxu0 0.0
    %1268 = vmatmul.mubr.f32.gmra.mrb[0].mxu0 %v321
    %v1269 = vpop.f32.mrb[0].mxu0
    %v1270 = vadd.f32 0.0, %v1269
    %v1271 = vpop.f32.mrb[0].mxu0
    %1272 = vmatprep.mubr.f32.mxu0 0.0
    %1273 = vmatmul.mubr.f32.gmra.mrb[0].mxu0 %v322
    %v1274 = vpop.f32.mrb[0].mxu0
    %v1275 = vadd.f32 0.0, %v1274
    %v1276 = vpop.f32.mrb[0].mxu0
    %1277 = vmatprep.mubr.f32.mxu0 0.0
    %1278 = vmatmul.mubr.f32.gmra.mrb[0].mxu0 %v323
    %v1279 = vpop.f32.mrb[0].mxu0
    %v1280 = vadd.f32 0.0, %v1279
    %v1281 = vpop.f32.mrb[0].mxu0
    %1282 = vmatprep.mubr.f32.mxu0 0.0
    %1283 = vmatmul.mubr.f32.gmra.mrb[0].mxu0 %v324
    %v1284 = vpop.f32.mrb[0].mxu0
    %v1285 = vadd.f32 0.0, %v1284
    %v1286 = vpop.f32.mrb[0].mxu0
    %1287 = vmatprep.mubr.f32.mxu0 0.0
    %1288 = vmatmul.mubr.f32.gmra.mrb[0].mxu0 %v325
    %v1289 = vpop.f32.mrb[0].mxu0
    %v1290 = vadd.f32 0.0, %v1289
    %v1291 = vpop.f32.mrb[0].mxu0
    %1292 = vmatprep.mubr.f32.mxu0 0.0
    %1293 = vmatmul.mubr.f32.gmra.mrb[0].mxu0 %v326
    %v1294 = vpop.f32.mrb[0].mxu0
    %v1295 = vadd.f32 0.0, %v1294
    %v1296 = vpop.f32.mrb[0].mxu0
    %1297 = vmatprep.mubr.f32.mxu0 0.0
    %1298 = vmatmul.mubr.f32.gmra.mrb[0].mxu0 %v327
    %v1299 = vpop.f32.mrb[0].mxu0
    %v1300 = vadd.f32 0.0, %v1299
    %v1301 = vpop.f32.mrb[0].mxu0
    %1302 = vmatprep.mubr.f32.mxu0 0.0
    %1303 = vmatmul.mubr.f32.gmra.mrb[0].mxu0 %v328
    %v1304 = vpop.f32.mrb[0].mxu0
    %v1305 = vadd.f32 0.0, %v1304
    %v1306 = vpop.f32.mrb[0].mxu0
    %1307 = vmatprep.mubr.f32.mxu0 0.0
    %1308 = vmatmul.mubr.f32.gmra.mrb[0].mxu0 %v329
    %v1309 = vpop.f32.mrb[0].mxu0
    %v1310 = vadd.f32 0.0, %v1309
    %v1311 = vpop.f32.mrb[0].mxu0
    %1312 = vmatprep.mubr.f32.mxu0 0.0
    %1313 = vmatmul.mubr.f32.gmra.mrb[0].mxu0 %v330
    %v1314 = vpop.f32.mrb[0].mxu0
    %v1315 = vadd.f32 0.0, %v1314
    %v1316 = vpop.f32.mrb[0].mxu0
    %1317 = vmatprep.mubr.f32.mxu0 0.0
    %1318 = vmatmul.mubr.f32.gmra.mrb[0].mxu0 %v331
    %v1319 = vpop.f32.mrb[0].mxu0
    %v1320 = vadd.f32 0.0, %v1319
    %v1321 = vpop.f32.mrb[0].mxu0
    %1322 = vmatprep.mubr.f32.mxu0 0.0
    %1323 = vmatmul.mubr.f32.gmra.mrb[0].mxu0 %v332
    %v1324 = vpop.f32.mrb[0].mxu0
    %v1325 = vadd.f32 0.0, %v1324
    %v1326 = vpop.f32.mrb[0].mxu0
    %1327 = vmatprep.mubr.f32.mxu0 0.0
    %1328 = vmatmul.mubr.f32.gmra.mrb[0].mxu0 %v333
    %v1329 = vpop.f32.mrb[0].mxu0
    %v1330 = vadd.f32 0.0, %v1329
    %v1331 = vpop.f32.mrb[0].mxu0
    %1332 = vmatprep.mubr.f32.mxu0 0.0
    %1333 = vmatmul.mubr.f32.gmra.mrb[0].mxu0 %v334
    %v1334 = vpop.f32.mrb[0].mxu0
    %v1335 = vadd.f32 0.0, %v1334
    %v1336 = vpop.f32.mrb[0].mxu0
    %1337 = vmatprep.mubr.f32.mxu0 0.0
    %1338 = vmatmul.mubr.f32.gmra.mrb[0].mxu0 %v335
    %v1339 = vpop.f32.mrb[0].mxu0
    %v1340 = vadd.f32 0.0, %v1339
    %v1341 = vpop.f32.mrb[0].mxu0
    %1342 = vmatprep.mubr.f32.mxu0 0.0
    %1343 = vmatmul.mubr.f32.gmra.mrb[0].mxu0 %v336
    %v1344 = vpop.f32.mrb[0].mxu0
    %v1345 = vadd.f32 0.0, %v1344
    %v1346 = vpop.f32.mrb[0].mxu0
    %1347 = vmatprep.mubr.f32.mxu0 0.0
    %1348 = vmatmul.mubr.f32.gmra.mrb[0].mxu0 %v337
    %v1349 = vpop.f32.mrb[0].mxu0
    %v1350 = vadd.f32 0.0, %v1349
    %v1351 = vpop.f32.mrb[0].mxu0
    %1352 = vmatprep.mubr.f32.mxu0 0.0
    %1353 = vmatmul.mubr.f32.gmra.mrb[0].mxu0 %v338
    %v1354 = vpop.f32.mrb[0].mxu0
    %v1355 = vadd.f32 0.0, %v1354
    %v1356 = vpop.f32.mrb[0].mxu0
    %1357 = vmatprep.mubr.f32.mxu0 0.0
    %1358 = vmatmul.mubr.f32.gmra.mrb[0].mxu0 %v339
    %v1359 = vpop.f32.mrb[0].mxu0
    %v1360 = vadd.f32 0.0, %v1359
    %v1361 = vpop.f32.mrb[0].mxu0
    %1362 = vmatprep.mubr.f32.mxu0 0.0
    %1363 = vmatmul.mubr.f32.gmra.mrb[0].mxu0 %v340
    %v1364 = vpop.f32.mrb[0].mxu0
    %v1365 = vadd.f32 0.0, %v1364
    %v1366 = vpop.f32.mrb[0].mxu0
    %1367 = vmatprep.mubr.f32.mxu0 0.0
    %1368 = vmatmul.mubr.f32.gmra.mrb[0].mxu0 %v341
    %v1369 = vpop.f32.mrb[0].mxu0
    %v1370 = vadd.f32 0.0, %v1369
    %v1371 = vpop.f32.mrb[0].mxu0
    %1372 = vmatprep.mubr.f32.mxu0 0.0
    %1373 = vmatmul.mubr.f32.gmra.mrb[0].mxu0 %v342
    %v1374 = vpop.f32.mrb[0].mxu0
    %v1375 = vadd.f32 0.0, %v1374
    %v1376 = vpop.f32.mrb[0].mxu0
    %1377 = vmatprep.mubr.f32.mxu0 0.0
    %1378 = vmatmul.mubr.f32.gmra.mrb[0].mxu0 %v343
    %v1379 = vpop.f32.mrb[0].mxu0
    %v1380 = vadd.f32 0.0, %v1379
    %v1381 = vpop.f32.mrb[0].mxu0
    %1382 = vmatprep.mubr.f32.mxu0 0.0
    %1383 = vmatmul.mubr.f32.gmra.mrb[0].mxu0 %v344
    %v1384 = vpop.f32.mrb[0].mxu0
    %v1385 = vadd.f32 0.0, %v1384
    %v1386 = vpop.f32.mrb[0].mxu0
    %1387 = vdwg.mxu0
    %v1388 = vadd.f32 %v1102, %v1220
    %v1389 = vadd.f32 %v1103, %v1225
    %v1390 = vadd.f32 %v1104, %v1230
    %v1391 = vadd.f32 %v1105, %v1235
    %v1392 = vadd.f32 %v1106, %v1240
    %v1393 = vadd.f32 %v1107, %v1245
    %v1394 = vadd.f32 %v1108, %v1250
    %v1395 = vadd.f32 %v1109, %v1255
    %v1396 = vadd.f32 %v1110, %v1260
    %v1397 = vadd.f32 %v1111, %v1265
    %v1398 = vadd.f32 %v1112, %v1270
    %v1399 = vadd.f32 %v1113, %v1275
    %v1400 = vadd.f32 %v1114, %v1280
    %v1401 = vadd.f32 %v1115, %v1285
    %v1402 = vadd.f32 %v1116, %v1290
    %v1403 = vadd.f32 %v1117, %v1295
    %v1404 = vadd.f32 %v1118, %v1300
    %v1405 = vadd.f32 %v1119, %v1305
    %v1406 = vadd.f32 %v1120, %v1310
    %v1407 = vadd.f32 %v1121, %v1315
    %v1408 = vadd.f32 %v1122, %v1320
    %v1409 = vadd.f32 %v1123, %v1325
    %v1410 = vadd.f32 %v1124, %v1330
    %v1411 = vadd.f32 %v1125, %v1335
    %v1412 = vadd.f32 %v1126, %v1340
    %v1413 = vadd.f32 %v1127, %v1345
    %v1414 = vadd.f32 %v1128, %v1350
    %v1415 = vadd.f32 %v1129, %v1355
    %v1416 = vadd.f32 %v1130, %v1360
    %v1417 = vadd.f32 %v1131, %v1365
    %v1418 = vadd.f32 %v1132, %v1370
    %v1419 = vadd.f32 %v1133, %v1375
    %v1420 = vadd.f32 %v1134, %v1380
    %v1421 = vadd.f32 %v1135, %v1385
    %s1422 = scalar_lea.vmem %s1, 512
    %v1423 = vld [vmem:[%s1422] sm:$0xff]
    %v1424 = vld [vmem:[%s1422 + $0x8] sm:$0xff]
    %v1425 = vld [vmem:[%s1422 + $0x10] sm:$0xff]
    %v1426 = vld [vmem:[%s1422 + $0x18] sm:$0xff]
    %v1427 = vld [vmem:[%s1422 + $0x20] sm:$0xff]
    %v1428 = vld [vmem:[%s1422 + $0x28] sm:$0xff]
    %v1429 = vld [vmem:[%s1422 + $0x30] sm:$0xff]
    %v1430 = vld [vmem:[%s1422 + $0x38] sm:$0xff]
    %v1431 = vld [vmem:[%s1422 + $0x40] sm:$0xff]
    %v1432 = vld [vmem:[%s1422 + $0x48] sm:$0xff]
    %v1433 = vld [vmem:[%s1422 + $0x50] sm:$0xff]
    %v1434 = vld [vmem:[%s1422 + $0x58] sm:$0xff]
    %v1435 = vld [vmem:[%s1422 + $0x60] sm:$0xff]
    %v1436 = vld [vmem:[%s1422 + $0x68] sm:$0xff]
    %v1437 = vld [vmem:[%s1422 + $0x70] sm:$0xff]
    %v1438 = vld [vmem:[%s1422 + $0x78] sm:$0xff]
    %1439 = vmatprep.subr.mxu0 0.0
    %1440 = vmatpush1.msra.mxu0 %v1423
    %1441 = vmatprep.subr.mxu0 0.0
    %1442 = vmatpush1.msra.mxu0 %v1424
    %1443 = vmatprep.subr.mxu0 0.0
    %1444 = vmatpush1.msra.mxu0 %v1425
    %1445 = vmatprep.subr.mxu0 0.0
    %1446 = vmatpush1.msra.mxu0 %v1426
    %1447 = vmatprep.subr.mxu0 0.0
    %1448 = vmatpush1.msra.mxu0 %v1427
    %1449 = vmatprep.subr.mxu0 0.0
    %1450 = vmatpush1.msra.mxu0 %v1428
    %1451 = vmatprep.subr.mxu0 0.0
    %1452 = vmatpush1.msra.mxu0 %v1429
    %1453 = vmatprep.subr.mxu0 0.0
    %1454 = vmatpush1.msra.mxu0 %v1430
    %1455 = vmatprep.subr.mxu0 0.0
    %1456 = vmatpush1.msra.mxu0 %v1431
    %1457 = vmatprep.subr.mxu0 0.0
    %1458 = vmatpush1.msra.mxu0 %v1432
    %1459 = vmatprep.subr.mxu0 0.0
    %1460 = vmatpush1.msra.mxu0 %v1433
    %1461 = vmatprep.subr.mxu0 0.0
    %1462 = vmatpush1.msra.mxu0 %v1434
    %1463 = vmatprep.subr.mxu0 0.0
    %1464 = vmatpush1.msra.mxu0 %v1435
    %1465 = vmatprep.subr.mxu0 0.0
    %1466 = vmatpush1.msra.mxu0 %v1436
    %1467 = vmatprep.subr.mxu0 0.0
    %1468 = vmatpush1.msra.mxu0 %v1437
    %1469 = vmatprep.subr.mxu0 0.0
    %1470 = vmatpush1.msra.mxu0 %v1438
    %1471 = vmatprep.subr.mxu0 0.0
    %1472 = vmatpush1.msra.mxu0 0.0
    %1473 = vmatprep.subr.mxu0 0.0
    %1474 = vmatpush1.msra.mxu0 0.0
    %1475 = vmatprep.subr.mxu0 0.0
    %1476 = vmatpush1.msra.mxu0 0.0
    %1477 = vmatprep.subr.mxu0 0.0
    %1478 = vmatpush1.msra.mxu0 0.0
    %1479 = vmatprep.subr.mxu0 0.0
    %1480 = vmatpush1.msra.mxu0 0.0
    %1481 = vmatprep.subr.mxu0 0.0
    %1482 = vmatpush1.msra.mxu0 0.0
    %1483 = vmatprep.subr.mxu0 0.0
    %1484 = vmatpush1.msra.mxu0 0.0
    %1485 = vmatprep.subr.mxu0 0.0
    %1486 = vmatpush1.msra.mxu0 0.0
    %1487 = vmatprep.subr.mxu0 0.0
    %1488 = vmatpush1.msra.mxu0 0.0
    %1489 = vmatprep.subr.mxu0 0.0
    %1490 = vmatpush1.msra.mxu0 0.0
    %1491 = vmatprep.subr.mxu0 0.0
    %1492 = vmatpush1.msra.mxu0 0.0
    %1493 = vmatprep.subr.mxu0 0.0
    %1494 = vmatpush1.msra.mxu0 0.0
    %1495 = vmatprep.subr.mxu0 0.0
    %1496 = vmatpush1.msra.mxu0 0.0
    %1497 = vmatprep.subr.mxu0 0.0
    %1498 = vmatpush1.msra.mxu0 0.0
    %1499 = vmatprep.subr.mxu0 0.0
    %1500 = vmatpush1.msra.mxu0 0.0
    %1501 = vmatprep.subr.mxu0 0.0
    %1502 = vmatpush1.msra.mxu0 0.0
    %1503 = vmatprep.mubr.f32.mxu0 0.0
    %1504 = vmatmul.mubr.f32.gmra.mrb[0].mxu0 %v313
    %v1505 = vpop.f32.mrb[0].mxu0
    %v1506 = vadd.f32 0.0, %v1505
    %v1507 = vpop.f32.mrb[0].mxu0
    %1508 = vmatprep.mubr.f32.mxu0 0.0
    %1509 = vmatmul.mubr.f32.gmra.mrb[0].mxu0 %v314
    %v1510 = vpop.f32.mrb[0].mxu0
    %v1511 = vadd.f32 0.0, %v1510
    %v1512 = vpop.f32.mrb[0].mxu0
    %1513 = vmatprep.mubr.f32.mxu0 0.0
    %1514 = vmatmul.mubr.f32.gmra.mrb[0].mxu0 %v315
    %v1515 = vpop.f32.mrb[0].mxu0
    %v1516 = vadd.f32 0.0, %v1515
    %v1517 = vpop.f32.mrb[0].mxu0
    %1518 = vmatprep.mubr.f32.mxu0 0.0
    %1519 = vmatmul.mubr.f32.gmra.mrb[0].mxu0 %v316
    %v1520 = vpop.f32.mrb[0].mxu0
    %v1521 = vadd.f32 0.0, %v1520
    %v1522 = vpop.f32.mrb[0].mxu0
    %1523 = vmatprep.mubr.f32.mxu0 0.0
    %1524 = vmatmul.mubr.f32.gmra.mrb[0].mxu0 %v317
    %v1525 = vpop.f32.mrb[0].mxu0
    %v1526 = vadd.f32 0.0, %v1525
    %v1527 = vpop.f32.mrb[0].mxu0
    %1528 = vmatprep.mubr.f32.mxu0 0.0
    %1529 = vmatmul.mubr.f32.gmra.mrb[0].mxu0 %v318
    %v1530 = vpop.f32.mrb[0].mxu0
    %v1531 = vadd.f32 0.0, %v1530
    %v1532 = vpop.f32.mrb[0].mxu0
    %1533 = vmatprep.mubr.f32.mxu0 0.0
    %1534 = vmatmul.mubr.f32.gmra.mrb[0].mxu0 %v319
    %v1535 = vpop.f32.mrb[0].mxu0
    %v1536 = vadd.f32 0.0, %v1535
    %v1537 = vpop.f32.mrb[0].mxu0
    %1538 = vmatprep.mubr.f32.mxu0 0.0
    %1539 = vmatmul.mubr.f32.gmra.mrb[0].mxu0 %v320
    %v1540 = vpop.f32.mrb[0].mxu0
    %v1541 = vadd.f32 0.0, %v1540
    %v1542 = vpop.f32.mrb[0].mxu0
    %1543 = vmatprep.mubr.f32.mxu0 0.0
    %1544 = vmatmul.mubr.f32.gmra.mrb[0].mxu0 %v321
    %v1545 = vpop.f32.mrb[0].mxu0
    %v1546 = vadd.f32 0.0, %v1545
    %v1547 = vpop.f32.mrb[0].mxu0
    %1548 = vmatprep.mubr.f32.mxu0 0.0
    %1549 = vmatmul.mubr.f32.gmra.mrb[0].mxu0 %v322
    %v1550 = vpop.f32.mrb[0].mxu0
    %v1551 = vadd.f32 0.0, %v1550
    %v1552 = vpop.f32.mrb[0].mxu0
    %1553 = vmatprep.mubr.f32.mxu0 0.0
    %1554 = vmatmul.mubr.f32.gmra.mrb[0].mxu0 %v323
    %v1555 = vpop.f32.mrb[0].mxu0
    %v1556 = vadd.f32 0.0, %v1555
    %v1557 = vpop.f32.mrb[0].mxu0
    %1558 = vmatprep.mubr.f32.mxu0 0.0
    %1559 = vmatmul.mubr.f32.gmra.mrb[0].mxu0 %v324
    %v1560 = vpop.f32.mrb[0].mxu0
    %v1561 = vadd.f32 0.0, %v1560
    %v1562 = vpop.f32.mrb[0].mxu0
    %1563 = vmatprep.mubr.f32.mxu0 0.0
    %1564 = vmatmul.mubr.f32.gmra.mrb[0].mxu0 %v325
    %v1565 = vpop.f32.mrb[0].mxu0
    %v1566 = vadd.f32 0.0, %v1565
    %v1567 = vpop.f32.mrb[0].mxu0
    %1568 = vmatprep.mubr.f32.mxu0 0.0
    %1569 = vmatmul.mubr.f32.gmra.mrb[0].mxu0 %v326
    %v1570 = vpop.f32.mrb[0].mxu0
    %v1571 = vadd.f32 0.0, %v1570
    %v1572 = vpop.f32.mrb[0].mxu0
    %1573 = vmatprep.mubr.f32.mxu0 0.0
    %1574 = vmatmul.mubr.f32.gmra.mrb[0].mxu0 %v327
    %v1575 = vpop.f32.mrb[0].mxu0
    %v1576 = vadd.f32 0.0, %v1575
    %v1577 = vpop.f32.mrb[0].mxu0
    %1578 = vmatprep.mubr.f32.mxu0 0.0
    %1579 = vmatmul.mubr.f32.gmra.mrb[0].mxu0 %v328
    %v1580 = vpop.f32.mrb[0].mxu0
    %v1581 = vadd.f32 0.0, %v1580
    %v1582 = vpop.f32.mrb[0].mxu0
    %1583 = vmatprep.mubr.f32.mxu0 0.0
    %1584 = vmatmul.mubr.f32.gmra.mrb[0].mxu0 %v329
    %v1585 = vpop.f32.mrb[0].mxu0
    %v1586 = vadd.f32 0.0, %v1585
    %v1587 = vpop.f32.mrb[0].mxu0
    %1588 = vmatprep.mubr.f32.mxu0 0.0
    %1589 = vmatmul.mubr.f32.gmra.mrb[0].mxu0 %v330
    %v1590 = vpop.f32.mrb[0].mxu0
    %v1591 = vadd.f32 0.0, %v1590
    %v1592 = vpop.f32.mrb[0].mxu0
    %1593 = vmatprep.mubr.f32.mxu0 0.0
    %1594 = vmatmul.mubr.f32.gmra.mrb[0].mxu0 %v331
    %v1595 = vpop.f32.mrb[0].mxu0
    %v1596 = vadd.f32 0.0, %v1595
    %v1597 = vpop.f32.mrb[0].mxu0
    %1598 = vmatprep.mubr.f32.mxu0 0.0
    %1599 = vmatmul.mubr.f32.gmra.mrb[0].mxu0 %v332
    %v1600 = vpop.f32.mrb[0].mxu0
    %v1601 = vadd.f32 0.0, %v1600
    %v1602 = vpop.f32.mrb[0].mxu0
    %1603 = vmatprep.mubr.f32.mxu0 0.0
    %1604 = vmatmul.mubr.f32.gmra.mrb[0].mxu0 %v333
    %v1605 = vpop.f32.mrb[0].mxu0
    %v1606 = vadd.f32 0.0, %v1605
    %v1607 = vpop.f32.mrb[0].mxu0
    %1608 = vmatprep.mubr.f32.mxu0 0.0
    %1609 = vmatmul.mubr.f32.gmra.mrb[0].mxu0 %v334
    %v1610 = vpop.f32.mrb[0].mxu0
    %v1611 = vadd.f32 0.0, %v1610
    %v1612 = vpop.f32.mrb[0].mxu0
    %1613 = vmatprep.mubr.f32.mxu0 0.0
    %1614 = vmatmul.mubr.f32.gmra.mrb[0].mxu0 %v335
    %v1615 = vpop.f32.mrb[0].mxu0
    %v1616 = vadd.f32 0.0, %v1615
    %v1617 = vpop.f32.mrb[0].mxu0
    %1618 = vmatprep.mubr.f32.mxu0 0.0
    %1619 = vmatmul.mubr.f32.gmra.mrb[0].mxu0 %v336
    %v1620 = vpop.f32.mrb[0].mxu0
    %v1621 = vadd.f32 0.0, %v1620
    %v1622 = vpop.f32.mrb[0].mxu0
    %1623 = vmatprep.mubr.f32.mxu0 0.0
    %1624 = vmatmul.mubr.f32.gmra.mrb[0].mxu0 %v337
    %v1625 = vpop.f32.mrb[0].mxu0
    %v1626 = vadd.f32 0.0, %v1625
    %v1627 = vpop.f32.mrb[0].mxu0
    %1628 = vmatprep.mubr.f32.mxu0 0.0
    %1629 = vmatmul.mubr.f32.gmra.mrb[0].mxu0 %v338
    %v1630 = vpop.f32.mrb[0].mxu0
    %v1631 = vadd.f32 0.0, %v1630
    %v1632 = vpop.f32.mrb[0].mxu0
    %1633 = vmatprep.mubr.f32.mxu0 0.0
    %1634 = vmatmul.mubr.f32.gmra.mrb[0].mxu0 %v339
    %v1635 = vpop.f32.mrb[0].mxu0
    %v1636 = vadd.f32 0.0, %v1635
    %v1637 = vpop.f32.mrb[0].mxu0
    %1638 = vmatprep.mubr.f32.mxu0 0.0
    %1639 = vmatmul.mubr.f32.gmra.mrb[0].mxu0 %v340
    %v1640 = vpop.f32.mrb[0].mxu0
    %v1641 = vadd.f32 0.0, %v1640
    %v1642 = vpop.f32.mrb[0].mxu0
    %1643 = vmatprep.mubr.f32.mxu0 0.0
    %1644 = vmatmul.mubr.f32.gmra.mrb[0].mxu0 %v341
    %v1645 = vpop.f32.mrb[0].mxu0
    %v1646 = vadd.f32 0.0, %v1645
    %v1647 = vpop.f32.mrb[0].mxu0
    %1648 = vmatprep.mubr.f32.mxu0 0.0
    %1649 = vmatmul.mubr.f32.gmra.mrb[0].mxu0 %v342
    %v1650 = vpop.f32.mrb[0].mxu0
    %v1651 = vadd.f32 0.0, %v1650
    %v1652 = vpop.f32.mrb[0].mxu0
    %1653 = vmatprep.mubr.f32.mxu0 0.0
    %1654 = vmatmul.mubr.f32.gmra.mrb[0].mxu0 %v343
    %v1655 = vpop.f32.mrb[0].mxu0
    %v1656 = vadd.f32 0.0, %v1655
    %v1657 = vpop.f32.mrb[0].mxu0
    %1658 = vmatprep.mubr.f32.mxu0 0.0
    %1659 = vmatmul.mubr.f32.gmra.mrb[0].mxu0 %v344
    %v1660 = vpop.f32.mrb[0].mxu0
    %v1661 = vadd.f32 0.0, %v1660
    %v1662 = vpop.f32.mrb[0].mxu0
    %1663 = vmatprep.mubr.f32.mxu0 0.0
    %1664 = vmatmul.mubr.f32.gmra.mrb[0].mxu0 %v345
    %v1665 = vpop.f32.mrb[0].mxu0
    %v1666 = vadd.f32 0.0, %v1665
    %v1667 = vpop.f32.mrb[0].mxu0
    %1668 = vmatprep.mubr.f32.mxu0 0.0
    %1669 = vmatmul.mubr.f32.gmra.mrb[0].mxu0 %v346
    %v1670 = vpop.f32.mrb[0].mxu0
    %v1671 = vadd.f32 0.0, %v1670
    %v1672 = vpop.f32.mrb[0].mxu0
    %1673 = vdwg.mxu0
    %v1674 = vadd.f32 %v1388, %v1506
    %v1675 = vadd.f32 %v1389, %v1511
    %v1676 = vadd.f32 %v1390, %v1516
    %v1677 = vadd.f32 %v1391, %v1521
    %v1678 = vadd.f32 %v1392, %v1526
    %v1679 = vadd.f32 %v1393, %v1531
    %v1680 = vadd.f32 %v1394, %v1536
    %v1681 = vadd.f32 %v1395, %v1541
    %v1682 = vadd.f32 %v1396, %v1546
    %v1683 = vadd.f32 %v1397, %v1551
    %v1684 = vadd.f32 %v1398, %v1556
    %v1685 = vadd.f32 %v1399, %v1561
    %v1686 = vadd.f32 %v1400, %v1566
    %v1687 = vadd.f32 %v1401, %v1571
    %v1688 = vadd.f32 %v1402, %v1576
    %v1689 = vadd.f32 %v1403, %v1581
    %v1690 = vadd.f32 %v1404, %v1586
    %v1691 = vadd.f32 %v1405, %v1591
    %v1692 = vadd.f32 %v1406, %v1596
    %v1693 = vadd.f32 %v1407, %v1601
    %v1694 = vadd.f32 %v1408, %v1606
    %v1695 = vadd.f32 %v1409, %v1611
    %v1696 = vadd.f32 %v1410, %v1616
    %v1697 = vadd.f32 %v1411, %v1621
    %v1698 = vadd.f32 %v1412, %v1626
    %v1699 = vadd.f32 %v1413, %v1631
    %v1700 = vadd.f32 %v1414, %v1636
    %v1701 = vadd.f32 %v1415, %v1641
    %v1702 = vadd.f32 %v1416, %v1646
    %v1703 = vadd.f32 %v1417, %v1651
    %v1704 = vadd.f32 %v1418, %v1656
    %v1705 = vadd.f32 %v1419, %v1661
    %v1706 = vadd.f32 %v1420, %v1666
    %v1707 = vadd.f32 %v1421, %v1671
    %v1708 = vmax.f32 %v1674, %v1676
    %v1709 = vmax.f32 %v1675, %v1677
    %v1710 = vmax.f32 %v1708, %v1678
    %v1711 = vmax.f32 %v1709, %v1679
    %v1712 = vmax.f32 %v1710, %v1680
    %v1713 = vmax.f32 %v1711, %v1681
    %v1714 = vmax.f32 %v1712, %v1682
    %v1715 = vmax.f32 %v1713, %v1683
    %v1716 = vmax.f32 %v1714, %v1684
    %v1717 = vmax.f32 %v1715, %v1685
    %v1718 = vmax.f32 %v1716, %v1686
    %v1719 = vmax.f32 %v1717, %v1687
    %v1720 = vmax.f32 %v1718, %v1688
    %v1721 = vmax.f32 %v1719, %v1689
    %v1722 = vmax.f32 %v1720, %v1690
    %v1723 = vmax.f32 %v1721, %v1691
    %v1724 = vmax.f32 %v1722, %v1692
    %v1725 = vmax.f32 %v1723, %v1693
    %v1726 = vmax.f32 %v1724, %v1694
    %v1727 = vmax.f32 %v1725, %v1695
    %v1728 = vmax.f32 %v1726, %v1696
    %v1729 = vmax.f32 %v1727, %v1697
    %v1730 = vmax.f32 %v1728, %v1698
    %v1731 = vmax.f32 %v1729, %v1699
    %v1732 = vmax.f32 %v1730, %v1700
    %v1733 = vmax.f32 %v1731, %v1701
    %v1734 = vmax.f32 %v1732, %v1702
    %v1735 = vmax.f32 %v1733, %v1703
    %v1736 = vmax.f32 %v1734, %v1704
    %v1737 = vmax.f32 %v1735, %v1705
    %v1738 = vmax.f32 %v1736, %v1706
    %v1739 = vmax.f32 %v1737, %v1707
    %v1740 = vld [vmem:[%s2] sm:$0x1]
    %v1742 = vlaneseq
    %v1743 = vshrl.u32 %v1742, 7
    %v1744 = vsub.s32 0, %v1743
    %v1745 = vrot.slane %v1740, %v1744
    %v1747 = vadd.f32 %v1738, %v1745
    %v1748 = vadd.f32 %v1739, %v1745
    %v1749 = vmax.f32 %v1747, 0.0
    %v1750 = vmax.f32 %v1748, 0.0
    %v1751 = vld [vmem:[%s3] sm:$0xff]
    %v1752 = vld [vmem:[%s3 + $0x8] sm:$0xff]
    %v1753 = vld [vmem:[%s3 + $0x10] sm:$0xff]
    %v1754 = vld [vmem:[%s3 + $0x18] sm:$0xff]
    %v1755 = vld [vmem:[%s3 + $0x20] sm:$0xff]
    %v1756 = vld [vmem:[%s3 + $0x28] sm:$0xff]
    %v1757 = vld [vmem:[%s3 + $0x30] sm:$0xff]
    %v1758 = vld [vmem:[%s3 + $0x38] sm:$0xff]
    %v1759 = vld [vmem:[%s3 + $0x40] sm:$0xff]
    %v1760 = vld [vmem:[%s3 + $0x48] sm:$0xff]
    %v1761 = vld [vmem:[%s3 + $0x50] sm:$0xff]
    %v1762 = vld [vmem:[%s3 + $0x58] sm:$0xff]
    %v1763 = vld [vmem:[%s3 + $0x60] sm:$0xff]
    %v1764 = vld [vmem:[%s3 + $0x68] sm:$0xff]
    %v1765 = vld [vmem:[%s3 + $0x70] sm:$0xff]
    %v1766 = vld [vmem:[%s3 + $0x78] sm:$0xff]
    %v1767 = vld [vmem:[%s4] sm:$0x1]
    %v1769 = vlaneseq
    %v1770 = vshrl.u32 %v1769, 7
    %v1771 = vsub.s32 0, %v1770
    %v1772 = vrot.slane %v1767, %v1771
    %1774 = vmatprep.subr.mxu0 0.0
    %1775 = vmatpush1.msra.mxu0 %v1751
    %1776 = vmatprep.subr.mxu0 0.0
    %1777 = vmatpush1.msra.mxu0 %v1752
    %1778 = vmatprep.subr.mxu0 0.0
    %1779 = vmatpush1.msra.mxu0 %v1753
    %1780 = vmatprep.subr.mxu0 0.0
    %1781 = vmatpush1.msra.mxu0 %v1754
    %1782 = vmatprep.subr.mxu0 0.0
    %1783 = vmatpush1.msra.mxu0 %v1755
    %1784 = vmatprep.subr.mxu0 0.0
    %1785 = vmatpush1.msra.mxu0 %v1756
    %1786 = vmatprep.subr.mxu0 0.0
    %1787 = vmatpush1.msra.mxu0 %v1757
    %1788 = vmatprep.subr.mxu0 0.0
    %1789 = vmatpush1.msra.mxu0 %v1758
    %1790 = vmatprep.subr.mxu0 0.0
    %1791 = vmatpush1.msra.mxu0 %v1759
    %1792 = vmatprep.subr.mxu0 0.0
    %1793 = vmatpush1.msra.mxu0 %v1760
    %1794 = vmatprep.subr.mxu0 0.0
    %1795 = vmatpush1.msra.mxu0 %v1761
    %1796 = vmatprep.subr.mxu0 0.0
    %1797 = vmatpush1.msra.mxu0 %v1762
    %1798 = vmatprep.subr.mxu0 0.0
    %1799 = vmatpush1.msra.mxu0 %v1763
    %1800 = vmatprep.subr.mxu0 0.0
    %1801 = vmatpush1.msra.mxu0 %v1764
    %1802 = vmatprep.subr.mxu0 0.0
    %1803 = vmatpush1.msra.mxu0 %v1765
    %1804 = vmatprep.subr.mxu0 0.0
    %1805 = vmatpush1.msra.mxu0 %v1766
    %1806 = vmatprep.subr.mxu0 0.0
    %1807 = vmatpush1.msra.mxu0 0.0
    %1808 = vmatprep.subr.mxu0 0.0
    %1809 = vmatpush1.msra.mxu0 0.0
    %1810 = vmatprep.subr.mxu0 0.0
    %1811 = vmatpush1.msra.mxu0 0.0
    %1812 = vmatprep.subr.mxu0 0.0
    %1813 = vmatpush1.msra.mxu0 0.0
    %1814 = vmatprep.subr.mxu0 0.0
    %1815 = vmatpush1.msra.mxu0 0.0
    %1816 = vmatprep.subr.mxu0 0.0
    %1817 = vmatpush1.msra.mxu0 0.0
    %1818 = vmatprep.subr.mxu0 0.0
    %1819 = vmatpush1.msra.mxu0 0.0
    %1820 = vmatprep.subr.mxu0 0.0
    %1821 = vmatpush1.msra.mxu0 0.0
    %1822 = vmatprep.subr.mxu0 0.0
    %1823 = vmatpush1.msra.mxu0 0.0
    %1824 = vmatprep.subr.mxu0 0.0
    %1825 = vmatpush1.msra.mxu0 0.0
    %1826 = vmatprep.subr.mxu0 0.0
    %1827 = vmatpush1.msra.mxu0 0.0
    %1828 = vmatprep.subr.mxu0 0.0
    %1829 = vmatpush1.msra.mxu0 0.0
    %1830 = vmatprep.subr.mxu0 0.0
    %1831 = vmatpush1.msra.mxu0 0.0
    %1832 = vmatprep.subr.mxu0 0.0
    %1833 = vmatpush1.msra.mxu0 0.0
    %1834 = vmatprep.subr.mxu0 0.0
    %1835 = vmatpush1.msra.mxu0 0.0
    %1836 = vmatprep.subr.mxu0 0.0
    %1837 = vmatpush1.msra.mxu0 0.0
    %1838 = vmatprep.mubr.f32.mxu0 0.0
    %1839 = vmatmul.mubr.f32.gmra.mrb[0].mxu0 %v1749
    %v1840 = vpop.f32.mrb[0].mxu0
    %v1841 = vadd.f32 %v1772, %v1840
    %v1842 = vpop.f32.mrb[0].mxu0
    %1843 = vmatprep.mubr.f32.mxu0 0.0
    %1844 = vmatmul.mubr.f32.gmra.mrb[0].mxu0 %v1750
    %v1845 = vpop.f32.mrb[0].mxu0
    %v1846 = vadd.f32 %v1772, %v1845
    %v1847 = vpop.f32.mrb[0].mxu0
    %1848 = vdwg.mxu0
    %v1849 = vmax.f32 %v1841, 0.0
    %v1850 = vmax.f32 %v1846, 0.0
    %v1851 = vld [vmem:[%s5] sm:$0xff]
    %v1852 = vld [vmem:[%s5 + $0x8] sm:$0xff]
    %v1853 = vld [vmem:[%s5 + $0x10] sm:$0xff]
    %v1854 = vld [vmem:[%s5 + $0x18] sm:$0xff]
    %v1855 = vld [vmem:[%s5 + $0x20] sm:$0xff]
    %v1856 = vld [vmem:[%s5 + $0x28] sm:$0xff]
    %v1857 = vld [vmem:[%s5 + $0x30] sm:$0xff]
    %v1858 = vld [vmem:[%s5 + $0x38] sm:$0xff]
    %v1859 = vld [vmem:[%s5 + $0x40] sm:$0xff]
    %v1860 = vld [vmem:[%s5 + $0x48] sm:$0xff]
    %v1861 = vld [vmem:[%s5 + $0x50] sm:$0xff]
    %v1862 = vld [vmem:[%s5 + $0x58] sm:$0xff]
    %v1863 = vld [vmem:[%s5 + $0x60] sm:$0xff]
    %v1864 = vld [vmem:[%s5 + $0x68] sm:$0xff]
    %v1865 = vld [vmem:[%s5 + $0x70] sm:$0xff]
    %v1866 = vld [vmem:[%s5 + $0x78] sm:$0xff]
    %v1867 = vld [vmem:[%s6] sm:$0x1]
    %v1869 = vlaneseq
    %v1870 = vshrl.u32 %v1869, 7
    %v1871 = vsub.s32 0, %v1870
    %v1872 = vrot.slane %v1867, %v1871
    %1874 = vmatprep.subr.mxu0 0.0
    %1875 = vmatpush1.msra.mxu0 %v1851
    %1876 = vmatprep.subr.mxu0 0.0
    %1877 = vmatpush1.msra.mxu0 %v1852
    %1878 = vmatprep.subr.mxu0 0.0
    %1879 = vmatpush1.msra.mxu0 %v1853
    %1880 = vmatprep.subr.mxu0 0.0
    %1881 = vmatpush1.msra.mxu0 %v1854
    %1882 = vmatprep.subr.mxu0 0.0
    %1883 = vmatpush1.msra.mxu0 %v1855
    %1884 = vmatprep.subr.mxu0 0.0
    %1885 = vmatpush1.msra.mxu0 %v1856
    %1886 = vmatprep.subr.mxu0 0.0
    %1887 = vmatpush1.msra.mxu0 %v1857
    %1888 = vmatprep.subr.mxu0 0.0
    %1889 = vmatpush1.msra.mxu0 %v1858
    %1890 = vmatprep.subr.mxu0 0.0
    %1891 = vmatpush1.msra.mxu0 %v1859
    %1892 = vmatprep.subr.mxu0 0.0
    %1893 = vmatpush1.msra.mxu0 %v1860
    %1894 = vmatprep.subr.mxu0 0.0
    %1895 = vmatpush1.msra.mxu0 %v1861
    %1896 = vmatprep.subr.mxu0 0.0
    %1897 = vmatpush1.msra.mxu0 %v1862
    %1898 = vmatprep.subr.mxu0 0.0
    %1899 = vmatpush1.msra.mxu0 %v1863
    %1900 = vmatprep.subr.mxu0 0.0
    %1901 = vmatpush1.msra.mxu0 %v1864
    %1902 = vmatprep.subr.mxu0 0.0
    %1903 = vmatpush1.msra.mxu0 %v1865
    %1904 = vmatprep.subr.mxu0 0.0
    %1905 = vmatpush1.msra.mxu0 %v1866
    %1906 = vmatprep.subr.mxu0 0.0
    %1907 = vmatpush1.msra.mxu0 0.0
    %1908 = vmatprep.subr.mxu0 0.0
    %1909 = vmatpush1.msra.mxu0 0.0
    %1910 = vmatprep.subr.mxu0 0.0
    %1911 = vmatpush1.msra.mxu0 0.0
    %1912 = vmatprep.subr.mxu0 0.0
    %1913 = vmatpush1.msra.mxu0 0.0
    %1914 = vmatprep.subr.mxu0 0.0
    %1915 = vmatpush1.msra.mxu0 0.0
    %1916 = vmatprep.subr.mxu0 0.0
    %1917 = vmatpush1.msra.mxu0 0.0
    %1918 = vmatprep.subr.mxu0 0.0
    %1919 = vmatpush1.msra.mxu0 0.0
    %1920 = vmatprep.subr.mxu0 0.0
    %1921 = vmatpush1.msra.mxu0 0.0
    %1922 = vmatprep.subr.mxu0 0.0
    %1923 = vmatpush1.msra.mxu0 0.0
    %1924 = vmatprep.subr.mxu0 0.0
    %1925 = vmatpush1.msra.mxu0 0.0
    %1926 = vmatprep.subr.mxu0 0.0
    %1927 = vmatpush1.msra.mxu0 0.0
    %1928 = vmatprep.subr.mxu0 0.0
    %1929 = vmatpush1.msra.mxu0 0.0
    %1930 = vmatprep.subr.mxu0 0.0
    %1931 = vmatpush1.msra.mxu0 0.0
    %1932 = vmatprep.subr.mxu0 0.0
    %1933 = vmatpush1.msra.mxu0 0.0
    %1934 = vmatprep.subr.mxu0 0.0
    %1935 = vmatpush1.msra.mxu0 0.0
    %1936 = vmatprep.subr.mxu0 0.0
    %1937 = vmatpush1.msra.mxu0 0.0
    %1938 = vmatprep.mubr.f32.mxu0 0.0
    %1939 = vmatmul.mubr.f32.gmra.mrb[0].mxu0 %v1749
    %v1940 = vpop.f32.mrb[0].mxu0
    %v1941 = vadd.f32 %v1872, %v1940
    %v1942 = vpop.f32.mrb[0].mxu0
    %1943 = vmatprep.mubr.f32.mxu0 0.0
    %1944 = vmatmul.mubr.f32.gmra.mrb[0].mxu0 %v1750
    %v1945 = vpop.f32.mrb[0].mxu0
    %v1946 = vadd.f32 %v1872, %v1945
    %v1947 = vpop.f32.mrb[0].mxu0
    %1948 = vdwg.mxu0
    %v1949 = vxor.u32 %v1941, 2147483648
    %v1950 = vxor.u32 %v1946, 2147483648
    %v1951 = vmul.f32 %v1949, 1.442695
    %v1952 = vpow.pop %v1951
    %v1953 = vmul.f32 %v1950, 1.442695
    %v1954 = vpow.pop %v1953
    %v1955 = vadd.f32 %v1952, 1.0
    %v1956 = vadd.f32 %v1954, 1.0
    %v1957 = vrcp.pop %v1955
    %v1958 = vmul.f32 1.0, %v1957
    %v1959 = vrcp.pop %v1956
    %v1960 = vmul.f32 1.0, %v1959
    %v1961 = vmul.f32 %v1849, %v1958
    %v1962 = vmul.f32 %v1850, %v1960
    %v1963 = vsub.f32 1.0, %v1958
    %v1964 = vsub.f32 1.0, %v1960
    %v1965 = vmul.f32 %v1963, %v1749
    %v1966 = vmul.f32 %v1964, %v1750
    %v1967 = vadd.f32 %v1961, %v1965
    %v1968 = vadd.f32 %v1962, %v1966
    %1969 = vst [vmem:[#allocation2] sm:$0xff] %v1967
    %1970 = vst [vmem:[#allocation2 + $0x8] sm:$0xff] %v1968
    // Predicated region
    $region30: #{model_embeddings_forward.1} parent=1 // pred_check
      _
    $region31: #{model_embeddings_forward.1} parent=1 // pred_check_branch
      %1972 = sbr.rel (0) target = $region33
    $region32: #{model_embeddings_forward.1} parent=1 // pred_region
      %s1974 = ssub.s32 256, 256
      %1975 = vsyncadd [#allocation3], %s1974
      %s1976 = sshll.u32 [#allocation2], 4
      %s1977 = int_to_ptr.vmem [resolvable:$true] %s1976
      %1982 = dma.vmem_to_hbm [thread:$0]  %s1977, 256, %s7, [#allocation3], 128, 128, 8
    $region33: #{model_embeddings_forward.1} parent=1 // pred_fallthru
      _
    // Predicated region
    $region34: #{model_embeddings_forward.1} parent=1 // pred_check
      _
    $region35: #{model_embeddings_forward.1} parent=1 // pred_check_branch
      %1984 = sbr.rel (0) target = $region37
    $region36: #{model_embeddings_forward.1} parent=1 // pred_region
      %1985 = dma.done [#allocation3], 256
    $region37: #{model_embeddings_forward.1} parent=1 // pred_fallthru
      _
    %1986 = vsyncpa [#allocation3], 1

</llo_original>
